<compile_context>
chip_gen: v6e
topology: v6e:2x2x1
jax: 0.10.0
libtpu: 0.0.40
codegen_flags: <defaults>
</compile_context>

<pallas_src>
import functools

import jax
import jax.numpy as jnp
from jax.experimental import pallas as pl
from jax.experimental.pallas import tpu as pltpu

_EPS = 1e-5
_MOMENTUM = 0.1          # d2l convention: moving = m*moving + (1-m)*batch (matches the spec)
_H_PAD = 128             # hidden width 100 zero-padded to a full lane width
_FUSED_H_LIMIT_BYTES = 8 * 1024 * 1024   # bf16 h-in-VMEM gate (safe on v5e scoped / v7x physical)


def _round_up(n, m):
    return (n + m - 1) // m * m


def _vmem_limit(nbytes):
    # Generous headroom over the estimated footprint, capped well inside v7x's
    # 64 MiB physical VMEM (v5e/v6e have 128 MiB physical).
    return int(min(max(2 * nbytes, 32 << 20), 48 << 20))


# ---------------------------------------------------------------------------
# One-time parameter preparation (transposes / zero-padding / casts hoisted
# out of the per-call path).  Zero padding of the hidden dim is numerically
# inert: padded h columns are 0, gamma/beta pads are 0 -> scale/shift 0 ->
# normalized pad columns stay 0, and the padded W2^T rows are 0.
# ---------------------------------------------------------------------------
def prepare_params(params):
    H = params["w1"].shape[0]          # 100
    pad = _H_PAD - H
    w1_t = jnp.pad(params["w1"].T.astype(jnp.float32), ((0, 0), (0, pad)))      # (784, 128)
    w2_t = jnp.pad(params["w2"].T.astype(jnp.float32), ((0, pad), (0, 0)))      # (128, 10)
    pad1 = lambda v: jnp.pad(v.reshape(1, -1).astype(jnp.float32), ((0, 0), (0, pad)))
    return {
        "w1_t_bf16": w1_t.astype(jnp.bfloat16),
        "b1": pad1(params["b1"]),
        "gamma": pad1(params["gamma"]),
        "beta": pad1(params["beta"]),
        "moving_mean": params["moving_mean"].astype(jnp.float32),   # (100,)
        "moving_var": params["moving_var"].astype(jnp.float32),     # (100,)
        "w2_t_bf16": w2_t.astype(jnp.bfloat16),
        "b2": params["b2"].reshape(1, -1).astype(jnp.float32),      # (1, 10)
    }


# ---------------------------------------------------------------------------
# Fused single-kernel path: phase 0 = matmul1 + stats (h kept in VMEM),
# phase 1 = BN affine + ReLU + matmul2.
# ---------------------------------------------------------------------------
def _make_fused_kernel(tile_b, batch_actual):
    inv_b = 1.0 / batch_actual

    def kernel(x_ref, w1_ref, b1_ref, gamma_ref, beta_ref, w2_ref, b2_ref,
               y_ref, mean_ref, var_ref,
               h_vmem, scale_sc, shift_sc):
        p = pl.program_id(0)   # phase
        i = pl.program_id(1)   # batch tile

        @pl.when(p == 0)
        def _phase0():
            @pl.when(i == 0)
            def _():
                mean_ref[...] = jnp.zeros_like(mean_ref)   # holds sum(h) until finalize
                var_ref[...] = jnp.zeros_like(var_ref)     # holds sum(h^2) until finalize

            # bf16 operands, f32 accumulation on the MXU; the in-kernel x cast is
            # VALU filler hidden under the x-tile DMA.
            h = jnp.dot(x_ref[...].astype(jnp.bfloat16), w1_ref[...],
                        preferred_element_type=jnp.float32) + b1_ref[...]

            # Mask batch-padding rows out of the BN statistics.
            row = i * tile_b + jax.lax.broadcasted_iota(jnp.int32, h.shape, 0)
            hm = jnp.where(row < batch_actual, h, 0.0)
            mean_ref[...] += jnp.sum(hm, axis=0, keepdims=True)
            var_ref[...] += jnp.sum(hm * hm, axis=0, keepdims=True)

            # Keep h resident in VMEM (lane-dense bf16) -- no HBM round trip.
            h_vmem[i] = h.astype(jnp.bfloat16)

        @pl.when(p == 1)
        def _phase1():
            @pl.when(i == 0)
            def _finalize_stats():
                mean = mean_ref[...] * inv_b
                var = jnp.maximum(var_ref[...] * inv_b - mean * mean, 0.0)
                mean_ref[...] = mean
                var_ref[...] = var
                scale = gamma_ref[...] * jax.lax.rsqrt(var + _EPS)   # EUP
                scale_sc[...] = scale
                shift_sc[...] = beta_ref[...] - scale * mean

            h = h_vmem[i].astype(jnp.float32)
            hn = jnp.maximum(h * scale_sc[...] + shift_sc[...], 0.0)
            y_ref[...] = jnp.dot(hn.astype(jnp.bfloat16), w2_ref[...],
                                 preferred_element_type=jnp.float32) + b2_ref[...]

    return kernel


def _fused_forward(x_p, prepared, tb, n_tiles, batch_actual):
    d_in = x_p.shape[1]
    d_out = prepared["b2"].shape[1]
    b_pad = n_tiles * tb
    last = n_tiles - 1

    vmem_bytes = (2 * tb * d_in * 4          # x f32, double-buffered
                  + b_pad * _H_PAD * 2       # resident h scratch (bf16)
                  + 2 * tb * 128 * 4         # y out (lane-padded), double-buffered
                  + 2 * d_in * _H_PAD * 2    # W1^T bf16
                  + (1 << 20))               # small residents / slack

    const = lambda p, i: (0, 0)

    y, mean, var = pl.pallas_call(
        _make_fused_kernel(tb, batch_actual),
        grid=(2, n_tiles),
        in_specs=[
            # x: tiled in phase 0, pinned to the last block in phase 1 (no refetch).
            pl.BlockSpec((tb, d_in), lambda p, i: ((1 - p) * i + p * last, 0)),
            pl.BlockSpec((d_in, _H_PAD), const),   # W1^T (resident)
            pl.BlockSpec((1, _H_PAD), const),      # b1
            pl.BlockSpec((1, _H_PAD), const),      # gamma
            pl.BlockSpec((1, _H_PAD), const),      # beta
            pl.BlockSpec((_H_PAD, d_out), const),  # W2^T (resident)
            pl.BlockSpec((1, d_out), const),       # b2
        ],
        out_specs=(
            # y: pinned to block 0 in phase 0 (never written/flushed), tiled in phase 1.
            pl.BlockSpec((tb, d_out), lambda p, i: (p * i, 0)),
            pl.BlockSpec((1, _H_PAD), const),      # batch mean (resident accumulator)
            pl.BlockSpec((1, _H_PAD), const),      # batch var  (resident accumulator)
        ),
        out_shape=(
            jax.ShapeDtypeStruct((b_pad, d_out), jnp.float32),
            jax.ShapeDtypeStruct((1, _H_PAD), jnp.float32),
            jax.ShapeDtypeStruct((1, _H_PAD), jnp.float32),
        ),
        scratch_shapes=[
            pltpu.VMEM((n_tiles, tb, _H_PAD), jnp.bfloat16),   # persistent h
            pltpu.VMEM((1, _H_PAD), jnp.float32),              # BN scale
            pltpu.VMEM((1, _H_PAD), jnp.float32),              # BN shift
        ],
        compiler_params=pltpu.CompilerParams(
            dimension_semantics=("arbitrary", "arbitrary"),
            vmem_limit_bytes=_vmem_limit(vmem_bytes),
        ),
    )(x_p, prepared["w1_t_bf16"], prepared["b1"], prepared["gamma"],
      prepared["beta"], prepared["w2_t_bf16"], prepared["b2"])

    return y, mean, var


# ---------------------------------------------------------------------------
# Two-pass fallback for very large batches (h to HBM as lane-dense bf16).
# Pass 1: leading size-2 "parallel" axis -> both v7x TensorCores, each with its
# own partial (1,1,128) stat accumulators; reduced in the wrapper.
# ---------------------------------------------------------------------------
def _make_stats_kernel(tile_b, batch_actual, tiles_per_core):
    def kernel(x_ref, w1_ref, b1_ref, h_ref, sum_ref, ssq_ref):
        c = pl.program_id(0)
        i = pl.program_id(1)

        @pl.when(i == 0)
        def _():
            sum_ref[...] = jnp.zeros_like(sum_ref)
            ssq_ref[...] = jnp.zeros_like(ssq_ref)

        h = jnp.dot(x_ref[...].astype(jnp.bfloat16), w1_ref[...],
                    preferred_element_type=jnp.float32) + b1_ref[...]
        h_ref[...] = h.astype(h_ref.dtype)

        row = (c * tiles_per_core + i) * tile_b + jax.lax.broadcasted_iota(
            jnp.int32, h.shape, 0)
        hm = jnp.where(row < batch_actual, h, 0.0)
        sum_ref[...] += jnp.sum(hm, axis=0, keepdims=True)[None]
        ssq_ref[...] += jnp.sum(hm * hm, axis=0, keepdims=True)[None]

    return kernel


def _apply_kernel(h_ref, scale_ref, shift_ref, w2_ref, b2_ref, y_ref):
    h = h_ref[...].astype(jnp.float32)
    h = jnp.maximum(h * scale_ref[...] + shift_ref[...], 0.0)
    y_ref[...] = jnp.dot(h.astype(jnp.bfloat16), w2_ref[...],
                         preferred_element_type=jnp.float32) + b2_ref[...]


def _two_pass_forward(x_p, prepared, tb, tiles_per_core, batch_actual):
    d_in = x_p.shape[1]
    d_out = prepared["b2"].shape[1]
    b_pad = 2 * tiles_per_core * tb
    n_total = b_pad // tb

    const2 = lambda *a: (0, 0)
    tile_map = lambda c, i: (c * tiles_per_core + i, 0)

    vmem1 = 2 * tb * d_in * 4 + 2 * tb * _H_PAD * 2 + 2 * d_in * _H_PAD * 2 + (1 << 20)
    h, part_sum, part_ssq = pl.pallas_call(
        _make_stats_kernel(tb, batch_actual, tiles_per_core),
        grid=(2, tiles_per_core),
        in_specs=[
            pl.BlockSpec((tb, d_in), tile_map),           # x tile (f32, cast in-kernel)
            pl.BlockSpec((d_in, _H_PAD), const2),         # W1^T (resident)
            pl.BlockSpec((1, _H_PAD), const2),            # b1
        ],
        out_specs=(
            pl.BlockSpec((tb, _H_PAD), tile_map),                      # h (bf16, lane-dense)
            pl.BlockSpec((1, 1, _H_PAD), lambda c, i: (c, 0, 0)),      # per-core sum
            pl.BlockSpec((1, 1, _H_PAD), lambda c, i: (c, 0, 0)),      # per-core sumsq
        ),
        out_shape=(
            jax.ShapeDtypeStruct((b_pad, _H_PAD), jnp.bfloat16),
            jax.ShapeDtypeStruct((2, 1, _H_PAD), jnp.float32),
            jax.ShapeDtypeStruct((2, 1, _H_PAD), jnp.float32),
        ),
        compiler_params=pltpu.CompilerParams(
            dimension_semantics=("parallel", "arbitrary"),
            vmem_limit_bytes=_vmem_limit(vmem1),
        ),
    )(x_p, prepared["w1_t_bf16"], prepared["b1"])

    # Tiny (1,128) XLA glue: reduce per-core partials, batch stats, fused BN affine.
    h_sum = part_sum.sum(axis=0)
    h_ssq = part_ssq.sum(axis=0)
    mean = h_sum / batch_actual
    var = jnp.maximum(h_ssq / batch_actual - mean * mean, 0.0)
    scale = prepared["gamma"] * jax.lax.rsqrt(var + _EPS)
    shift = prepared["beta"] - scale * mean

    vmem2 = 2 * tb * _H_PAD * 2 + 2 * tb * 128 * 4 + (1 << 20)
    y = pl.pallas_call(
        _apply_kernel,
        grid=(n_total,),
        in_specs=[
            pl.BlockSpec((tb, _H_PAD), lambda i: (i, 0)),   # h tile (bf16)
            pl.BlockSpec((1, _H_PAD), lambda i: (0, 0)),    # scale
            pl.BlockSpec((1, _H_PAD), lambda i: (0, 0)),    # shift
            pl.BlockSpec((_H_PAD, d_out), lambda i: (0, 0)),
            pl.BlockSpec((1, d_out), lambda i: (0, 0)),
        ],
        out_specs=pl.BlockSpec((tb, d_out), lambda i: (i, 0)),
        out_shape=jax.ShapeDtypeStruct((b_pad, d_out), jnp.float32),
        compiler_params=pltpu.CompilerParams(
            dimension_semantics=("parallel",),
            vmem_limit_bytes=_vmem_limit(vmem2),
        ),
    )(h, scale, shift, prepared["w2_t_bf16"], prepared["b2"])

    return y, mean, var


# ---------------------------------------------------------------------------
# Wrapper
# ---------------------------------------------------------------------------
@functools.partial(jax.jit, static_argnames=("block_b", "force_two_pass"))
def multi_network_forward(x, prepared, *, block_b=2048, force_two_pass=False):
    """x: (B, 784) f32. Returns (y (B, 10), new_moving_mean, new_moving_var)."""
    B, _ = x.shape
    H = prepared["moving_mean"].shape[0]   # true hidden width (100)

    tb = min(block_b, _round_up(B, 8))
    x32 = x.astype(jnp.float32)

    n_tiles_fused = pl.cdiv(B, tb)
    use_fused = (not force_two_pass) and (
        n_tiles_fused * tb * _H_PAD * 2 <= _FUSED_H_LIMIT_BYTES)

    if use_fused:
        b_pad = n_tiles_fused * tb
        x_p = x32 if b_pad == B else jnp.pad(x32, ((0, b_pad - B), (0, 0)))
        y, mean, var = _fused_forward(x_p, prepared, tb, n_tiles_fused, B)
    else:
        b_pad = _round_up(B, 2 * tb)
        tiles_per_core = b_pad // (2 * tb)
        x_p = x32 if b_pad == B else jnp.pad(x32, ((0, b_pad - B), (0, 0)))
        y, mean, var = _two_pass_forward(x_p, prepared, tb, tiles_per_core, B)

    mean = mean[:, :H].reshape(-1)
    var = var[:, :H].reshape(-1)
    new_mm = _MOMENTUM * prepared["moving_mean"] + (1.0 - _MOMENTUM) * mean
    new_mv = _MOMENTUM * prepared["moving_var"] + (1.0 - _MOMENTUM) * var
    return y[:B], new_mm, new_mv


# ---------------------------------------------------------------------------
# Pure-JAX reference (mirrors the PyTorch module in training mode; the first
# matmul's operands are cast to bf16 like the kernel's MXU path).
# ---------------------------------------------------------------------------
def _reference_forward(x, params):
    eps, momentum = 1e-5, 0.1
    h = jnp.dot(x.astype(jnp.bfloat16), params["w1"].T.astype(jnp.bfloat16),
                preferred_element_type=jnp.float32) + params["b1"]
    mean = jnp.mean(h, axis=0, keepdims=True)
    var = jnp.mean((h - mean) ** 2, axis=0, keepdims=True)
    x_hat = (h - mean) / jnp.sqrt(var + eps)
    new_mm = momentum * params["moving_mean"] + (1.0 - momentum) * mean.reshape(-1)
    new_mv = momentum * params["moving_var"] + (1.0 - momentum) * var.reshape(-1)
    h = params["gamma"].reshape(1, -1) * x_hat + params["beta"].reshape(1, -1)
    h = jnp.maximum(h, 0.0)
    return h @ params["w2"].T + params["b2"], new_mm, new_mv


def _init_params(key):
    """Deterministic synthetic parameters matching the module's __init__ shapes."""
    ks = jax.random.split(key, 6)
    lim1 = 1.0 / jnp.sqrt(784.0)
    lim2 = 1.0 / jnp.sqrt(100.0)
    return {
        "w1": jax.random.uniform(ks[0], (100, 784), jnp.float32, -lim1, lim1),
        "b1": jax.random.uniform(ks[1], (100,), jnp.float32, -lim1, lim1),
        "w2": jax.random.uniform(ks[2], (10, 100), jnp.float32, -lim2, lim2),
        "b2": jax.random.uniform(ks[3], (10,), jnp.float32, -lim2, lim2),
        "gamma": jax.random.normal(ks[4], (100,), jnp.float32),
        "beta": jax.random.normal(ks[5], (100,), jnp.float32),
        "moving_mean": jnp.zeros((100,), jnp.float32),
        "moving_var": jnp.zeros((100,), jnp.float32),
    }


if __name__ == "__main__":
    key = jax.random.PRNGKey(0)
    pkey, xkey = jax.random.split(key)
    params = _init_params(pkey)
    prepared = prepare_params(params)

    B = 8  # small batch; feature dim 784 fixed by the module
    x = jax.random.normal(xkey, (B, 784), jnp.float32)

    y_ref, mm_ref, mv_ref = _reference_forward(x, params)

    # Default fused single-kernel path (h never leaves VMEM).
    y, new_mm, new_mv = multi_network_forward(x, prepared)
    jax.block_until_ready((y, new_mm, new_mv))
    assert y.shape == (B, 10)
    assert jnp.allclose(y, y_ref, atol=1e-2, rtol=1e-2), "fused: output mismatch"
    assert jnp.allclose(new_mm, mm_ref, atol=5e-3, rtol=5e-3), "fused: moving_mean mismatch"
    assert jnp.allclose(new_mv, mv_ref, atol=5e-3, rtol=5e-3), "fused: moving_var mismatch"

    # Two-pass fallback (auto-selected for very large batches) -- exercised here too.
    y2, mm2, mv2 = multi_network_forward(x, prepared, force_two_pass=True)
    jax.block_until_ready((y2, mm2, mv2))
    assert jnp.allclose(y2, y_ref, atol=1e-2, rtol=1e-2), "two-pass: output mismatch"
    assert jnp.allclose(mm2, mm_ref, atol=5e-3, rtol=5e-3), "two-pass: moving_mean mismatch"
    assert jnp.allclose(mv2, mv_ref, atol=5e-3, rtol=5e-3), "two-pass: moving_var mismatch"

    print("KERNEL_OK")
</pallas_src>

<mosaic_0001>
module attributes {stable_mosaic.version = 11 : i64} {
  func.func @kernel(%arg0: i32, %arg1: i32, %arg2: memref<8x784xf32, #tpu.memory_space<vmem>>, %arg3: memref<784x128xbf16, #tpu.memory_space<vmem>>, %arg4: memref<1x128xf32, #tpu.memory_space<vmem>>, %arg5: memref<1x128xf32, #tpu.memory_space<vmem>>, %arg6: memref<1x128xf32, #tpu.memory_space<vmem>>, %arg7: memref<128x10xbf16, #tpu.memory_space<vmem>>, %arg8: memref<1x10xf32, #tpu.memory_space<vmem>>, %arg9: memref<8x10xf32, #tpu.memory_space<vmem>>, %arg10: memref<1x128xf32, #tpu.memory_space<vmem>>, %arg11: memref<1x128xf32, #tpu.memory_space<vmem>>, %arg12: memref<1x8x128xbf16, #tpu.memory_space<vmem>>, %arg13: memref<1x128xf32, #tpu.memory_space<vmem>>, %arg14: memref<1x128xf32, #tpu.memory_space<vmem>>) attributes {dimension_semantics = [#tpu.dimension_semantics<arbitrary>, #tpu.dimension_semantics<arbitrary>], iteration_bounds = array<i64: 2, 1>, scalar_prefetch = 0 : i64, scratch_operands = 3 : i64, tpu.core_type = #tpu.core_type<tc>, window_params = [{transform_indices = @transform_0, window_bounds = array<i64: 8, 784>}, {pipeline_mode = #tpu.pipeline_mode<synchronous>, transform_indices = @transform_1, window_bounds = array<i64: 784, 128>}, {pipeline_mode = #tpu.pipeline_mode<synchronous>, transform_indices = @transform_2, window_bounds = array<i64: 1, 128>}, {pipeline_mode = #tpu.pipeline_mode<synchronous>, transform_indices = @transform_3, window_bounds = array<i64: 1, 128>}, {pipeline_mode = #tpu.pipeline_mode<synchronous>, transform_indices = @transform_4, window_bounds = array<i64: 1, 128>}, {pipeline_mode = #tpu.pipeline_mode<synchronous>, transform_indices = @transform_5, window_bounds = array<i64: 128, 10>}, {pipeline_mode = #tpu.pipeline_mode<synchronous>, transform_indices = @transform_6, window_bounds = array<i64: 1, 10>}, {transform_indices = @transform_7, window_bounds = array<i64: 8, 10>}, {pipeline_mode = #tpu.pipeline_mode<synchronous>, transform_indices = @transform_8, window_bounds = array<i64: 1, 128>}, {pipeline_mode = #tpu.pipeline_mode<synchronous>, transform_indices = @transform_9, window_bounds = array<i64: 1, 128>}]} {
    %c0_i32 = arith.constant 0 : i32
    %0 = arith.cmpi eq, %arg0, %c0_i32 : i32
    %1 = arith.extui %0 : i1 to i32
    %c0_i32_0 = arith.constant 0 : i32
    %2 = arith.cmpi ne, %1, %c0_i32_0 : i32
    scf.if %2 {
      %c0_i32_2 = arith.constant 0 : i32
      %6 = arith.cmpi eq, %arg1, %c0_i32_2 : i32
      %7 = arith.extui %6 : i1 to i32
      %c0_i32_3 = arith.constant 0 : i32
      %8 = arith.cmpi ne, %7, %c0_i32_3 : i32
      scf.if %8 {
        %cst_23 = arith.constant 0.000000e+00 : f32
        %40 = vector.broadcast %cst_23 : f32 to vector<1x128xf32>
        %c0_24 = arith.constant 0 : index
        %c0_25 = arith.constant 0 : index
        %41 = vector.load %arg10[%c0_24, %c0_25] : memref<1x128xf32, #tpu.memory_space<vmem>>, vector<1x128xf32>
        tpu.vector_store %arg10[%c0_24, %c0_25], %40 {strides = array<i32>} : memref<1x128xf32, #tpu.memory_space<vmem>>, vector<1x128xf32>,
        %cst_26 = arith.constant 0.000000e+00 : f32
        %42 = vector.broadcast %cst_26 : f32 to vector<1x128xf32>
        %c0_27 = arith.constant 0 : index
        %c0_28 = arith.constant 0 : index
        %43 = vector.load %arg11[%c0_27, %c0_28] : memref<1x128xf32, #tpu.memory_space<vmem>>, vector<1x128xf32>
        tpu.vector_store %arg11[%c0_27, %c0_28], %42 {strides = array<i32>} : memref<1x128xf32, #tpu.memory_space<vmem>>, vector<1x128xf32>,
      } else {
      }
      %c0 = arith.constant 0 : index
      %c0_4 = arith.constant 0 : index
      %9 = vector.load %arg2[%c0, %c0_4] : memref<8x784xf32, #tpu.memory_space<vmem>>, vector<8x784xf32>
      %10 = arith.truncf %9 : vector<8x784xf32> to vector<8x784xbf16>
      %c0_5 = arith.constant 0 : index
      %c0_6 = arith.constant 0 : index
      %11 = vector.load %arg3[%c0_5, %c0_6] : memref<784x128xbf16, #tpu.memory_space<vmem>>, vector<784x128xbf16>
      %cst = arith.constant dense<0.000000e+00> : vector<8x128xf32>
      %12 = tpu.matmul %10, %11, %cst {dimension_numbers = #tpu.dot_dimension_numbers<[1], [0], [0], [1], [0, 0, 1, 1], [], []>} : vector<8x784xbf16>, vector<784x128xbf16>, vector<8x128xf32> -> vector<8x128xf32>
      %c0_7 = arith.constant 0 : index
      %c0_8 = arith.constant 0 : index
      %13 = vector.load %arg4[%c0_7, %c0_8] : memref<1x128xf32, #tpu.memory_space<vmem>>, vector<1x128xf32>
      %14 = vector.broadcast %13 : vector<1x128xf32> to vector<8x128xf32>
      %15 = arith.addf %12, %14 : vector<8x128xf32>
      %c8_i32 = arith.constant 8 : i32
      %16 = arith.muli %arg1, %c8_i32 : i32
      %17 = tpu.iota {dimensions = array<i32: 0>} : vector<8x128xi32>
      %18 = vector.broadcast %16 : i32 to vector<8x128xi32>
      %19 = arith.addi %18, %17 : vector<8x128xi32>
      %c8_i32_9 = arith.constant 8 : i32
      %20 = vector.broadcast %c8_i32_9 : i32 to vector<8x128xi32>
      %21 = arith.cmpi slt, %19, %20 : vector<8x128xi32>
      %cst_10 = arith.constant 0.000000e+00 : f32
      %22 = vector.broadcast %cst_10 : f32 to vector<8x128xf32>
      %23 = arith.select %21, %15, %22 : vector<8x128xi1>, vector<8x128xf32>
      %c0_11 = arith.constant 0 : index
      %c0_12 = arith.constant 0 : index
      %24 = vector.load %arg10[%c0_11, %c0_12] : memref<1x128xf32, #tpu.memory_space<vmem>>, vector<1x128xf32>
      %cst_13 = arith.constant dense<0.000000e+00> : vector<128xf32>
      %25 = vector.multi_reduction <add>, %23, %cst_13 [0] : vector<8x128xf32> to vector<128xf32>
      %26 = vector.shape_cast %25 : vector<128xf32> to vector<1x128xf32>
      %27 = arith.addf %24, %26 : vector<1x128xf32>
      %c0_14 = arith.constant 0 : index
      %c0_15 = arith.constant 0 : index
      %28 = vector.load %arg10[%c0_14, %c0_15] : memref<1x128xf32, #tpu.memory_space<vmem>>, vector<1x128xf32>
      tpu.vector_store %arg10[%c0_14, %c0_15], %27 {strides = array<i32>} : memref<1x128xf32, #tpu.memory_space<vmem>>, vector<1x128xf32>,
      %c0_16 = arith.constant 0 : index
      %c0_17 = arith.constant 0 : index
      %29 = vector.load %arg11[%c0_16, %c0_17] : memref<1x128xf32, #tpu.memory_space<vmem>>, vector<1x128xf32>
      %30 = arith.mulf %23, %23 : vector<8x128xf32>
      %cst_18 = arith.constant dense<0.000000e+00> : vector<128xf32>
      %31 = vector.multi_reduction <add>, %30, %cst_18 [0] : vector<8x128xf32> to vector<128xf32>
      %32 = vector.shape_cast %31 : vector<128xf32> to vector<1x128xf32>
      %33 = arith.addf %29, %32 : vector<1x128xf32>
      %c0_19 = arith.constant 0 : index
      %c0_20 = arith.constant 0 : index
      %34 = vector.load %arg11[%c0_19, %c0_20] : memref<1x128xf32, #tpu.memory_space<vmem>>, vector<1x128xf32>
      tpu.vector_store %arg11[%c0_19, %c0_20], %33 {strides = array<i32>} : memref<1x128xf32, #tpu.memory_space<vmem>>, vector<1x128xf32>,
      %35 = arith.truncf %15 : vector<8x128xf32> to vector<8x128xbf16>
      %36 = arith.index_cast %arg1 : i32 to index
      %c0_21 = arith.constant 0 : index
      %c0_22 = arith.constant 0 : index
      %37 = vector.load %arg12[%36, %c0_21, %c0_22] : memref<1x8x128xbf16, #tpu.memory_space<vmem>>, vector<1x8x128xbf16>
      %38 = vector.shape_cast %37 : vector<1x8x128xbf16> to vector<8x128xbf16>
      %39 = vector.shape_cast %35 : vector<8x128xbf16> to vector<1x8x128xbf16>
      tpu.vector_store %arg12[%36, %c0_21, %c0_22], %39 {strides = array<i32>} : memref<1x8x128xbf16, #tpu.memory_space<vmem>>, vector<1x8x128xbf16>,
    } else {
    }
    %c1_i32 = arith.constant 1 : i32
    %3 = arith.cmpi eq, %arg0, %c1_i32 : i32
    %4 = arith.extui %3 : i1 to i32
    %c0_i32_1 = arith.constant 0 : i32
    %5 = arith.cmpi ne, %4, %c0_i32_1 : i32
    scf.if %5 {
      %c0_i32_2 = arith.constant 0 : i32
      %6 = arith.cmpi eq, %arg1, %c0_i32_2 : i32
      %7 = arith.extui %6 : i1 to i32
      %c0_i32_3 = arith.constant 0 : i32
      %8 = arith.cmpi ne, %7, %c0_i32_3 : i32
      scf.if %8 {
        %c0_16 = arith.constant 0 : index
        %c0_17 = arith.constant 0 : index
        %28 = vector.load %arg10[%c0_16, %c0_17] : memref<1x128xf32, #tpu.memory_space<vmem>>, vector<1x128xf32>
        %cst_18 = arith.constant 1.250000e-01 : f32
        %29 = vector.broadcast %cst_18 : f32 to vector<1x128xf32>
        %30 = arith.mulf %28, %29 : vector<1x128xf32>
        %c0_19 = arith.constant 0 : index
        %c0_20 = arith.constant 0 : index
        %31 = vector.load %arg11[%c0_19, %c0_20] : memref<1x128xf32, #tpu.memory_space<vmem>>, vector<1x128xf32>
        %cst_21 = arith.constant 1.250000e-01 : f32
        %32 = vector.broadcast %cst_21 : f32 to vector<1x128xf32>
        %33 = arith.mulf %31, %32 : vector<1x128xf32>
        %34 = arith.mulf %30, %30 : vector<1x128xf32>
        %35 = arith.subf %33, %34 : vector<1x128xf32>
        %cst_22 = arith.constant 0.000000e+00 : f32
        %36 = vector.broadcast %cst_22 : f32 to vector<1x128xf32>
        %37 = arith.maximumf %35, %36 : vector<1x128xf32>
        %c0_23 = arith.constant 0 : index
        %c0_24 = arith.constant 0 : index
        %38 = vector.load %arg10[%c0_23, %c0_24] : memref<1x128xf32, #tpu.memory_space<vmem>>, vector<1x128xf32>
        tpu.vector_store %arg10[%c0_23, %c0_24], %30 {strides = array<i32>} : memref<1x128xf32, #tpu.memory_space<vmem>>, vector<1x128xf32>,
        %c0_25 = arith.constant 0 : index
        %c0_26 = arith.constant 0 : index
        %39 = vector.load %arg11[%c0_25, %c0_26] : memref<1x128xf32, #tpu.memory_space<vmem>>, vector<1x128xf32>
        tpu.vector_store %arg11[%c0_25, %c0_26], %37 {strides = array<i32>} : memref<1x128xf32, #tpu.memory_space<vmem>>, vector<1x128xf32>,
        %c0_27 = arith.constant 0 : index
        %c0_28 = arith.constant 0 : index
        %40 = vector.load %arg5[%c0_27, %c0_28] : memref<1x128xf32, #tpu.memory_space<vmem>>, vector<1x128xf32>
        %cst_29 = arith.constant 9.99999974E-6 : f32
        %41 = vector.broadcast %cst_29 : f32 to vector<1x128xf32>
        %42 = arith.addf %37, %41 : vector<1x128xf32>
        %43 = math.rsqrt %42 : vector<1x128xf32>
        %44 = arith.mulf %40, %43 : vector<1x128xf32>
        %c0_30 = arith.constant 0 : index
        %c0_31 = arith.constant 0 : index
        %45 = vector.load %arg13[%c0_30, %c0_31] : memref<1x128xf32, #tpu.memory_space<vmem>>, vector<1x128xf32>
        tpu.vector_store %arg13[%c0_30, %c0_31], %44 {strides = array<i32>} : memref<1x128xf32, #tpu.memory_space<vmem>>, vector<1x128xf32>,
        %c0_32 = arith.constant 0 : index
        %c0_33 = arith.constant 0 : index
        %46 = vector.load %arg6[%c0_32, %c0_33] : memref<1x128xf32, #tpu.memory_space<vmem>>, vector<1x128xf32>
        %47 = arith.mulf %44, %30 : vector<1x128xf32>
        %48 = arith.subf %46, %47 : vector<1x128xf32>
        %c0_34 = arith.constant 0 : index
        %c0_35 = arith.constant 0 : index
        %49 = vector.load %arg14[%c0_34, %c0_35] : memref<1x128xf32, #tpu.memory_space<vmem>>, vector<1x128xf32>
        tpu.vector_store %arg14[%c0_34, %c0_35], %48 {strides = array<i32>} : memref<1x128xf32, #tpu.memory_space<vmem>>, vector<1x128xf32>,
      } else {
      }
      %9 = arith.index_cast %arg1 : i32 to index
      %c0 = arith.constant 0 : index
      %c0_4 = arith.constant 0 : index
      %10 = vector.load %arg12[%9, %c0, %c0_4] : memref<1x8x128xbf16, #tpu.memory_space<vmem>>, vector<1x8x128xbf16>
      %11 = vector.shape_cast %10 : vector<1x8x128xbf16> to vector<8x128xbf16>
      %12 = arith.extf %11 : vector<8x128xbf16> to vector<8x128xf32>
      %c0_5 = arith.constant 0 : index
      %c0_6 = arith.constant 0 : index
      %13 = vector.load %arg13[%c0_5, %c0_6] : memref<1x128xf32, #tpu.memory_space<vmem>>, vector<1x128xf32>
      %14 = vector.broadcast %13 : vector<1x128xf32> to vector<8x128xf32>
      %15 = arith.mulf %12, %14 : vector<8x128xf32>
      %c0_7 = arith.constant 0 : index
      %c0_8 = arith.constant 0 : index
      %16 = vector.load %arg14[%c0_7, %c0_8] : memref<1x128xf32, #tpu.memory_space<vmem>>, vector<1x128xf32>
      %17 = vector.broadcast %16 : vector<1x128xf32> to vector<8x128xf32>
      %18 = arith.addf %15, %17 : vector<8x128xf32>
      %cst = arith.constant 0.000000e+00 : f32
      %19 = vector.broadcast %cst : f32 to vector<8x128xf32>
      %20 = arith.maximumf %18, %19 : vector<8x128xf32>
      %21 = arith.truncf %20 : vector<8x128xf32> to vector<8x128xbf16>
      %c0_9 = arith.constant 0 : index
      %c0_10 = arith.constant 0 : index
      %22 = vector.load %arg7[%c0_9, %c0_10] : memref<128x10xbf16, #tpu.memory_space<vmem>>, vector<128x10xbf16>
      %cst_11 = arith.constant dense<0.000000e+00> : vector<8x10xf32>
      %23 = tpu.matmul %21, %22, %cst_11 {dimension_numbers = #tpu.dot_dimension_numbers<[1], [0], [0], [1], [0, 0, 1, 1], [], []>} : vector<8x128xbf16>, vector<128x10xbf16>, vector<8x10xf32> -> vector<8x10xf32>
      %c0_12 = arith.constant 0 : index
      %c0_13 = arith.constant 0 : index
      %24 = vector.load %arg8[%c0_12, %c0_13] : memref<1x10xf32, #tpu.memory_space<vmem>>, vector<1x10xf32>
      %25 = vector.broadcast %24 : vector<1x10xf32> to vector<8x10xf32>
      %26 = arith.addf %23, %25 : vector<8x10xf32>
      %c0_14 = arith.constant 0 : index
      %c0_15 = arith.constant 0 : index
      %27 = vector.load %arg9[%c0_14, %c0_15] : memref<8x10xf32, #tpu.memory_space<vmem>>, vector<8x10xf32>
      tpu.vector_store %arg9[%c0_14, %c0_15], %26 {strides = array<i32>} : memref<8x10xf32, #tpu.memory_space<vmem>>, vector<8x10xf32>,
    } else {
    }
    return
  }
  func.func @transform_0(%arg0: i32, %arg1: i32) -> (i32, i32) {
    %c1_i32 = arith.constant 1 : i32
    %0 = arith.subi %c1_i32, %arg0 : i32
    %1 = arith.muli %0, %arg1 : i32
    %c0_i32 = arith.constant 0 : i32
    %2 = arith.muli %arg0, %c0_i32 : i32
    %3 = arith.addi %1, %2 : i32
    %c0_i32_0 = arith.constant 0 : i32
    %c0_i32_1 = arith.constant 0 : i32
    return %3, %c0_i32_0 : i32, i32
  }
  func.func @transform_1(%arg0: i32, %arg1: i32) -> (i32, i32) {
    %c0_i32 = arith.constant 0 : i32
    %c0_i32_0 = arith.constant 0 : i32
    %c0_i32_1 = arith.constant 0 : i32
    return %c0_i32, %c0_i32_0 : i32, i32
  }
  func.func @transform_2(%arg0: i32, %arg1: i32) -> (i32, i32) {
    %c0_i32 = arith.constant 0 : i32
    %c0_i32_0 = arith.constant 0 : i32
    %c0_i32_1 = arith.constant 0 : i32
    return %c0_i32, %c0_i32_0 : i32, i32
  }
  func.func @transform_3(%arg0: i32, %arg1: i32) -> (i32, i32) {
    %c0_i32 = arith.constant 0 : i32
    %c0_i32_0 = arith.constant 0 : i32
    %c0_i32_1 = arith.constant 0 : i32
    return %c0_i32, %c0_i32_0 : i32, i32
  }
  func.func @transform_4(%arg0: i32, %arg1: i32) -> (i32, i32) {
    %c0_i32 = arith.constant 0 : i32
    %c0_i32_0 = arith.constant 0 : i32
    %c0_i32_1 = arith.constant 0 : i32
    return %c0_i32, %c0_i32_0 : i32, i32
  }
  func.func @transform_5(%arg0: i32, %arg1: i32) -> (i32, i32) {
    %c0_i32 = arith.constant 0 : i32
    %c0_i32_0 = arith.constant 0 : i32
    %c0_i32_1 = arith.constant 0 : i32
    return %c0_i32, %c0_i32_0 : i32, i32
  }
  func.func @transform_6(%arg0: i32, %arg1: i32) -> (i32, i32) {
    %c0_i32 = arith.constant 0 : i32
    %c0_i32_0 = arith.constant 0 : i32
    %c0_i32_1 = arith.constant 0 : i32
    return %c0_i32, %c0_i32_0 : i32, i32
  }
  func.func @transform_7(%arg0: i32, %arg1: i32) -> (i32, i32) {
    %0 = arith.muli %arg0, %arg1 : i32
    %c0_i32 = arith.constant 0 : i32
    %c0_i32_0 = arith.constant 0 : i32
    return %0, %c0_i32 : i32, i32
  }
  func.func @transform_8(%arg0: i32, %arg1: i32) -> (i32, i32) {
    %c0_i32 = arith.constant 0 : i32
    %c0_i32_0 = arith.constant 0 : i32
    %c0_i32_1 = arith.constant 0 : i32
    return %c0_i32, %c0_i32_0 : i32, i32
  }
  func.func @transform_9(%arg0: i32, %arg1: i32) -> (i32, i32) {
    %c0_i32 = arith.constant 0 : i32
    %c0_i32_0 = arith.constant 0 : i32
    %c0_i32_1 = arith.constant 0 : i32
    return %c0_i32, %c0_i32_0 : i32, i32
  }
}

</mosaic_0001>

<llo_original>
// kernel: multi_network_forward.1
$region0: #{multi_network_forward.1}
  #allocation0 [shape = 'u32[]', space=smem, size = 0x4, offset = 0x4, fixed_abs, tag = 'smem constant byte address 0x4 - core index']
  #allocation1 [shape = 'u32[144,128]{1,0:T(1,128)}', space=vmem, size = 0x12000, scoped, tag = 'internal scratch']
  #allocation2 [shape = 'bf16[1,8,128]{2,1,0:T(8,128)(2,1)}', space=vmem, size = 0x800, scoped, tag = 'scratch operand']
  #allocation3 [shape = 'f32[1,128]{1,0:T(1,128)}', space=vmem, size = 0x200, scoped, tag = 'scratch operand']
  #allocation4 [shape = 'f32[1,128]{1,0:T(1,128)}', space=vmem, size = 0x200, scoped, tag = 'scratch operand']
  %s0 = inlined_call_operand.vmem [shape: f32[8,784], index: 0, kind: input, shape index: {}]
  %s1 = inlined_call_operand.hbm [shape: bf16[784,128], index: 1, kind: input, shape index: {}]
  %s2 = inlined_call_operand.vmem [shape: f32[1,128], index: 2, kind: input, shape index: {}]
  %s3 = inlined_call_operand.vmem [shape: f32[1,128], index: 3, kind: input, shape index: {}]
  %s4 = inlined_call_operand.vmem [shape: f32[1,128], index: 4, kind: input, shape index: {}]
  %s5 = inlined_call_operand.vmem [shape: bf16[128,10], index: 5, kind: input, shape index: {}]
  %s6 = inlined_call_operand.vmem [shape: f32[1,10], index: 6, kind: input, shape index: {}]
  %s7 = inlined_call_operand.hbm [shape: f32[8,10], index: 7, kind: output, shape index: {0}]
  %s8 = inlined_call_operand.vmem [shape: f32[1,128], index: 8, kind: output, shape index: {1}]
  %s9 = inlined_call_operand.vmem [shape: f32[1,128], index: 9, kind: output, shape index: {2}]
  %10 = xla_tuple %s7, %s8, %s9
  %s11 = sld [smem:[#allocation0]]
  $region97: #{multi_network_forward.1} parent=0
    _
  %s13 = ssub.s32 1, %s11
  %s14 = scalar_select 0, %s13, %s11
  $region1: #{multi_network_forward.1} parent=0
    #allocation5 [shape = 'u8[200704]{0}', space=vmem, size = 0x31000, scoped, tag = 'input window, operand 1, single buffered']
    #allocation6 [shape = 's32[2]{0}', space=sflag, size = 0x8, scoped, tag = 'scoped memory for multi_network_forward.1']
    #allocation7 [shape = 's32[2]{0}', space=sflag, size = 0x8, scoped, tag = 'scoped memory for multi_network_forward.1']
    #allocation8 [shape = 'u8[8192]{0}', space=vmem, size = 0x2000, scoped, tag = 'output window, operand 0']
    %15 = vsyncpa [#allocation6], 0
    %16 = vsyncpa [#allocation7], 0
    %s17 = scalar_lea.sflag [#allocation7], 1
    %18 = vsyncpa %s17, 0
    loop: start=0, step=1, limit=4
    $region2: #{multi_network_forward.1} parent=1 // loop_pre_header
      _
    $region3: #{multi_network_forward.1} parent=1 // loop_header
      %s20 = sphi 0, %s24
      %p21 = scmp.ge.s32.totalorder %s20, 4
      %s27 = sphi 0, %s39
      %s28 = sphi 0, %s35
      %s29 = sphi 0, %s27
      %s30 = sphi 0, %s28
      %s31 = sphi 0, %s29
      %s32 = sphi 0, %s30
      %s46 = sphi 0, %s48
      %s49 = sphi 0, %s46
      %s50 = sphi 0, %s49
      %s66 = sphi 0, %s50
      %s70 = sphi 0, %s70
      %s72 = sphi 0, %s70
      %s73 = sphi 0, %s72
      %s87 = sphi 0, %s73
      %s91 = sphi 0, %s91
      %s93 = sphi 0, %s91
      %s94 = sphi 0, %s93
      %s108 = sphi 0, %s94
      %s112 = sphi 0, %s112
      %s114 = sphi 0, %s112
      %s115 = sphi 0, %s114
      %s129 = sphi 0, %s115
      %s133 = sphi 0, %s133
      %s135 = sphi 0, %s133
      %s136 = sphi 0, %s135
      %s150 = sphi 0, %s136
      %s154 = sphi 0, %s154
      %s156 = sphi 0, %s154
      %s157 = sphi 0, %s156
      %s171 = sphi 0, %s157
      %s175 = sphi 0, %s175
      %s177 = sphi 0, %s175
      %s178 = sphi 0, %s177
      %s192 = sphi 0, %s178
      %s200 = sphi 0, %s202
      %s203 = sphi 0, %s200
      %s204 = sphi 0, %s203
      %s220 = sphi 0, %s204
      %s224 = sphi 0, %s224
      %s226 = sphi 0, %s224
      %s227 = sphi 0, %s226
      %s241 = sphi 0, %s227
      %s245 = sphi 0, %s245
      %s247 = sphi 0, %s245
      %s248 = sphi 0, %s247
      %s262 = sphi 0, %s248
    $region4: #{multi_network_forward.1} parent=1 // loop_header_branch
      %23 = sbr.rel (%p21) target = $region8
    $region5: #{multi_network_forward.1} parent=1 // loop_body
      %s25 = ssub.s32 %s20, 1
      %s26 = ssub.s32 %s20, 2
      %s33 = sadd.s32 1, %s28
      %p34 = scmp.ge.s32.totalorder %s33, 1
      %s35 = scalar_select %p34, 0, %s33
      %s36 = sadd.s32 1, %s27
      %s37 = scalar_select %p34, %s36, %s27
      %p38 = scmp.ge.s32.totalorder %s37, 2
      %s39 = scalar_select %p38, 0, %s37
      %s40 = ssub.s32 1, %s27
      %s41 = smul.u32 %s40, %s28
      %s42 = ssub.s32 1, %s39
      %s43 = smul.u32 %s42, %s35
      %s44 = ssub.s32 %s41, %s43
      %p45 = scmp.eq.s32.totalorder %s44, 0
      %s47 = sadd.s32 %s46, 1
      %s48 = scalar_select %p45, %s46, %s47
      %p51 = pneg %p45
      %p52 = scmp.eq.s32.totalorder %s20, 1
      %p53 = por %p51, %p52
      %p54 = scmp.ne.s32.totalorder %s46, %s49
      %p55 = scmp.eq.s32.totalorder %s20, 0
      %p56 = por %p54, %p55
      %p57 = scmp.ne.s32.totalorder %s46, %s49
      %p58 = scmp.eq.s32.totalorder %s25, 1
      %p59 = por %p57, %p58
      %p60 = scmp.ne.s32.totalorder %s49, %s50
      %p61 = scmp.eq.s32.totalorder %s25, 0
      %p62 = por %p60, %p61
      %p63 = scmp.ne.s32.totalorder %s49, %s50
      %p64 = scmp.eq.s32.totalorder %s26, 1
      %p65 = por %p63, %p64
      %p67 = scmp.ne.s32.totalorder %s50, %s66
      %p68 = scmp.eq.s32.totalorder %s26, 0
      %p69 = por %p67, %p68
      %s71 = sadd.s32 %s70, 1
      %p74 = scmp.eq.s32.totalorder %s20, 1
      %p75 = scmp.ne.s32.totalorder %s70, %s72
      %p76 = scmp.eq.s32.totalorder %s20, 0
      %p77 = por %p75, %p76
      %p78 = scmp.ne.s32.totalorder %s70, %s72
      %p79 = scmp.eq.s32.totalorder %s25, 1
      %p80 = por %p78, %p79
      %p81 = scmp.ne.s32.totalorder %s72, %s73
      %p82 = scmp.eq.s32.totalorder %s25, 0
      %p83 = por %p81, %p82
      %p84 = scmp.ne.s32.totalorder %s72, %s73
      %p85 = scmp.eq.s32.totalorder %s26, 1
      %p86 = por %p84, %p85
      %p88 = scmp.ne.s32.totalorder %s73, %s87
      %p89 = scmp.eq.s32.totalorder %s26, 0
      %p90 = por %p88, %p89
      %s92 = sadd.s32 %s91, 1
      %p95 = scmp.eq.s32.totalorder %s20, 1
      %p96 = scmp.ne.s32.totalorder %s91, %s93
      %p97 = scmp.eq.s32.totalorder %s20, 0
      %p98 = por %p96, %p97
      %p99 = scmp.ne.s32.totalorder %s91, %s93
      %p100 = scmp.eq.s32.totalorder %s25, 1
      %p101 = por %p99, %p100
      %p102 = scmp.ne.s32.totalorder %s93, %s94
      %p103 = scmp.eq.s32.totalorder %s25, 0
      %p104 = por %p102, %p103
      %p105 = scmp.ne.s32.totalorder %s93, %s94
      %p106 = scmp.eq.s32.totalorder %s26, 1
      %p107 = por %p105, %p106
      %p109 = scmp.ne.s32.totalorder %s94, %s108
      %p110 = scmp.eq.s32.totalorder %s26, 0
      %p111 = por %p109, %p110
      %s113 = sadd.s32 %s112, 1
      %p116 = scmp.eq.s32.totalorder %s20, 1
      %p117 = scmp.ne.s32.totalorder %s112, %s114
      %p118 = scmp.eq.s32.totalorder %s20, 0
      %p119 = por %p117, %p118
      %p120 = scmp.ne.s32.totalorder %s112, %s114
      %p121 = scmp.eq.s32.totalorder %s25, 1
      %p122 = por %p120, %p121
      %p123 = scmp.ne.s32.totalorder %s114, %s115
      %p124 = scmp.eq.s32.totalorder %s25, 0
      %p125 = por %p123, %p124
      %p126 = scmp.ne.s32.totalorder %s114, %s115
      %p127 = scmp.eq.s32.totalorder %s26, 1
      %p128 = por %p126, %p127
      %p130 = scmp.ne.s32.totalorder %s115, %s129
      %p131 = scmp.eq.s32.totalorder %s26, 0
      %p132 = por %p130, %p131
      %s134 = sadd.s32 %s133, 1
      %p137 = scmp.eq.s32.totalorder %s20, 1
      %p138 = scmp.ne.s32.totalorder %s133, %s135
      %p139 = scmp.eq.s32.totalorder %s20, 0
      %p140 = por %p138, %p139
      %p141 = scmp.ne.s32.totalorder %s133, %s135
      %p142 = scmp.eq.s32.totalorder %s25, 1
      %p143 = por %p141, %p142
      %p144 = scmp.ne.s32.totalorder %s135, %s136
      %p145 = scmp.eq.s32.totalorder %s25, 0
      %p146 = por %p144, %p145
      %p147 = scmp.ne.s32.totalorder %s135, %s136
      %p148 = scmp.eq.s32.totalorder %s26, 1
      %p149 = por %p147, %p148
      %p151 = scmp.ne.s32.totalorder %s136, %s150
      %p152 = scmp.eq.s32.totalorder %s26, 0
      %p153 = por %p151, %p152
      %s155 = sadd.s32 %s154, 1
      %p158 = scmp.eq.s32.totalorder %s20, 1
      %p159 = scmp.ne.s32.totalorder %s154, %s156
      %p160 = scmp.eq.s32.totalorder %s20, 0
      %p161 = por %p159, %p160
      %p162 = scmp.ne.s32.totalorder %s154, %s156
      %p163 = scmp.eq.s32.totalorder %s25, 1
      %p164 = por %p162, %p163
      %p165 = scmp.ne.s32.totalorder %s156, %s157
      %p166 = scmp.eq.s32.totalorder %s25, 0
      %p167 = por %p165, %p166
      %p168 = scmp.ne.s32.totalorder %s156, %s157
      %p169 = scmp.eq.s32.totalorder %s26, 1
      %p170 = por %p168, %p169
      %p172 = scmp.ne.s32.totalorder %s157, %s171
      %p173 = scmp.eq.s32.totalorder %s26, 0
      %p174 = por %p172, %p173
      %s176 = sadd.s32 %s175, 1
      %p179 = scmp.eq.s32.totalorder %s20, 1
      %p180 = scmp.ne.s32.totalorder %s175, %s177
      %p181 = scmp.eq.s32.totalorder %s20, 0
      %p182 = por %p180, %p181
      %p183 = scmp.ne.s32.totalorder %s175, %s177
      %p184 = scmp.eq.s32.totalorder %s25, 1
      %p185 = por %p183, %p184
      %p186 = scmp.ne.s32.totalorder %s177, %s178
      %p187 = scmp.eq.s32.totalorder %s25, 0
      %p188 = por %p186, %p187
      %p189 = scmp.ne.s32.totalorder %s177, %s178
      %p190 = scmp.eq.s32.totalorder %s26, 1
      %p191 = por %p189, %p190
      %p193 = scmp.ne.s32.totalorder %s178, %s192
      %p194 = scmp.eq.s32.totalorder %s26, 0
      %p195 = por %p193, %p194
      %s196 = smul.u32 %s27, %s28
      %s197 = smul.u32 %s39, %s35
      %s198 = ssub.s32 %s196, %s197
      %p199 = scmp.eq.s32.totalorder %s198, 0
      %s201 = sadd.s32 %s200, 1
      %s202 = scalar_select %p199, %s200, %s201
      %p205 = pneg %p199
      %p206 = scmp.eq.s32.totalorder %s20, 1
      %p207 = por %p205, %p206
      %p208 = scmp.ne.s32.totalorder %s200, %s203
      %p209 = scmp.eq.s32.totalorder %s20, 0
      %p210 = por %p208, %p209
      %p211 = scmp.ne.s32.totalorder %s200, %s203
      %p212 = scmp.eq.s32.totalorder %s25, 1
      %p213 = por %p211, %p212
      %p214 = scmp.ne.s32.totalorder %s203, %s204
      %p215 = scmp.eq.s32.totalorder %s25, 0
      %p216 = por %p214, %p215
      %p217 = scmp.ne.s32.totalorder %s203, %s204
      %p218 = scmp.eq.s32.totalorder %s26, 1
      %p219 = por %p217, %p218
      %p221 = scmp.ne.s32.totalorder %s204, %s220
      %p222 = scmp.eq.s32.totalorder %s26, 0
      %p223 = por %p221, %p222
      %s225 = sadd.s32 %s224, 1
      %p228 = scmp.eq.s32.totalorder %s20, 1
      %p229 = scmp.ne.s32.totalorder %s224, %s226
      %p230 = scmp.eq.s32.totalorder %s20, 0
      %p231 = por %p229, %p230
      %p232 = scmp.ne.s32.totalorder %s224, %s226
      %p233 = scmp.eq.s32.totalorder %s25, 1
      %p234 = por %p232, %p233
      %p235 = scmp.ne.s32.totalorder %s226, %s227
      %p236 = scmp.eq.s32.totalorder %s25, 0
      %p237 = por %p235, %p236
      %p238 = scmp.ne.s32.totalorder %s226, %s227
      %p239 = scmp.eq.s32.totalorder %s26, 1
      %p240 = por %p238, %p239
      %p242 = scmp.ne.s32.totalorder %s227, %s241
      %p243 = scmp.eq.s32.totalorder %s26, 0
      %p244 = por %p242, %p243
      %s246 = sadd.s32 %s245, 1
      %p249 = scmp.eq.s32.totalorder %s20, 1
      %p250 = scmp.ne.s32.totalorder %s245, %s247
      %p251 = scmp.eq.s32.totalorder %s20, 0
      %p252 = por %p250, %p251
      %p253 = scmp.ne.s32.totalorder %s245, %s247
      %p254 = scmp.eq.s32.totalorder %s25, 1
      %p255 = por %p253, %p254
      %p256 = scmp.ne.s32.totalorder %s247, %s248
      %p257 = scmp.eq.s32.totalorder %s25, 0
      %p258 = por %p256, %p257
      %p259 = scmp.ne.s32.totalorder %s247, %s248
      %p260 = scmp.eq.s32.totalorder %s26, 1
      %p261 = por %p259, %p260
      %p263 = scmp.ne.s32.totalorder %s248, %s262
      %p264 = scmp.eq.s32.totalorder %s26, 0
      %p265 = por %p263, %p264
      %p266 = scmp.le.s32.totalorder 1, %s20
      %p267 = scmp.lt.s32.totalorder %s20, 3
      %p268 = pnand %p266, %p267
      %p269 = pneg %p268
      // Predicated region
      $region9: #{multi_network_forward.1} parent=5 // pred_check
        _
      $region10: #{multi_network_forward.1} parent=5 // pred_check_branch
        %271 = sbr.rel (%p268) target = $region12
      $region11: #{multi_network_forward.1} parent=5 // pred_region
        %s272 = ssub.s32 %s20, 1
        // Predicated region
        $region13: #{multi_network_forward.1} parent=11 // pred_check
          %p273 = pneg %p83
        $region14: #{multi_network_forward.1} parent=11 // pred_check_branch
          %275 = sbr.rel (%p273) target = $region16
        $region15: #{multi_network_forward.1} parent=11 // pred_region
          %s277 = ssub.s32 6272, 6272
          %278 = vsyncadd [#allocation6], %s277
          %s279 = sshll.u32 [#allocation5], 4
          %s280 = int_to_ptr.vmem [resolvable:$true] %s279
          %285 = dma.hbm_to_vmem [thread:$0]  %s1, 6272, %s280, [#allocation6], 64, 64, 4
        $region16: #{multi_network_forward.1} parent=11 // pred_fallthru
          _
        // Predicated region
        $region17: #{multi_network_forward.1} parent=11 // pred_check
          %p286 = pneg %p104
        $region18: #{multi_network_forward.1} parent=11 // pred_check_branch
          %288 = sbr.rel (%p286) target = $region20
        $region19: #{multi_network_forward.1} parent=11 // pred_region
          _
        $region20: #{multi_network_forward.1} parent=11 // pred_fallthru
          _
        // Predicated region
        $region21: #{multi_network_forward.1} parent=11 // pred_check
          %p289 = pneg %p125
        $region22: #{multi_network_forward.1} parent=11 // pred_check_branch
          %291 = sbr.rel (%p289) target = $region24
        $region23: #{multi_network_forward.1} parent=11 // pred_region
          _
        $region24: #{multi_network_forward.1} parent=11 // pred_fallthru
          _
        // Predicated region
        $region25: #{multi_network_forward.1} parent=11 // pred_check
          %p292 = pneg %p146
        $region26: #{multi_network_forward.1} parent=11 // pred_check_branch
          %294 = sbr.rel (%p292) target = $region28
        $region27: #{multi_network_forward.1} parent=11 // pred_region
          _
        $region28: #{multi_network_forward.1} parent=11 // pred_fallthru
          _
        // Predicated region
        $region29: #{multi_network_forward.1} parent=11 // pred_check
          %p295 = pneg %p167
        $region30: #{multi_network_forward.1} parent=11 // pred_check_branch
          %297 = sbr.rel (%p295) target = $region32
        $region31: #{multi_network_forward.1} parent=11 // pred_region
          _
        $region32: #{multi_network_forward.1} parent=11 // pred_fallthru
          _
        // Predicated region
        $region33: #{multi_network_forward.1} parent=11 // pred_check
          %p298 = pneg %p188
        $region34: #{multi_network_forward.1} parent=11 // pred_check_branch
          %300 = sbr.rel (%p298) target = $region36
        $region35: #{multi_network_forward.1} parent=11 // pred_region
          _
        $region36: #{multi_network_forward.1} parent=11 // pred_fallthru
          _
      $region12: #{multi_network_forward.1} parent=5 // pred_fallthru
        _
      %p301 = scmp.lt.s32.totalorder %s20, 2
      // Predicated region
      $region37: #{multi_network_forward.1} parent=5 // pred_check
        %p302 = pneg %p301
      $region38: #{multi_network_forward.1} parent=5 // pred_check_branch
        %304 = sbr.rel (%p302) target = $region40
      $region39: #{multi_network_forward.1} parent=5 // pred_region
        // Predicated region
        $region41: #{multi_network_forward.1} parent=39 // pred_check
          %p305 = pneg %p56
        $region42: #{multi_network_forward.1} parent=39 // pred_check_branch
          %307 = sbr.rel (%p305) target = $region44
        $region43: #{multi_network_forward.1} parent=39 // pred_region
          %s308 = ssub.s32 1, %s27
          %s309 = smul.u32 %s308, %s28
          %p310 = scmp.lt.s32.totalorder %s309, 0
          %s311 = scalar_select %p310, %s309, 0
          %s312 = smul.addr %s311, 7
          %s313 = smul.addr %s312, 8
          %s314 = scalar_lea.vmem %s0, %s313
          %s315 = ssub.s32 1, %s27
          %s316 = smul.u32 %s315, %s28
        $region44: #{multi_network_forward.1} parent=39 // pred_fallthru
          _
      $region40: #{multi_network_forward.1} parent=5 // pred_fallthru
        _
      %p317 = scmp.le.s32.totalorder 1, %s20
      %p318 = scmp.lt.s32.totalorder %s20, 3
      %p319 = pnand %p317, %p318
      %p320 = pneg %p319
      // Predicated region
      $region45: #{multi_network_forward.1} parent=5 // pred_check
        _
      $region46: #{multi_network_forward.1} parent=5 // pred_check_branch
        %322 = sbr.rel (%p319) target = $region48
      $region47: #{multi_network_forward.1} parent=5 // pred_region
        %s323 = ssub.s32 %s20, 1
        // Predicated region
        $region49: #{multi_network_forward.1} parent=47 // pred_check
          %p324 = pneg %p83
        $region50: #{multi_network_forward.1} parent=47 // pred_check_branch
          %326 = sbr.rel (%p324) target = $region52
        $region51: #{multi_network_forward.1} parent=47 // pred_region
          %327 = dma.done [#allocation6], 6272
        $region52: #{multi_network_forward.1} parent=47 // pred_fallthru
          _
        %s328 = ssub.s32 1, %s29
        %s329 = smul.u32 %s328, %s30
        %p330 = scmp.lt.s32.totalorder %s329, 0
        %s331 = scalar_select %p330, %s329, 0
        %s332 = smul.addr %s331, 7
        %s333 = smul.addr %s332, 8
        %s334 = scalar_lea.vmem %s0, %s333
        %p335 = pneg %p62
        %p336 = pneg %p59
        %p337 = pneg %p83
        %p338 = pneg %p80
        %p339 = pneg %p104
        %p340 = pneg %p101
        %p341 = pneg %p125
        %p342 = pneg %p122
        %p343 = pneg %p146
        %p344 = pneg %p143
        %p345 = pneg %p167
        %p346 = pneg %p164
        %p347 = pneg %p188
        %p348 = pneg %p185
        %p349 = pneg %p216
        %p350 = pneg %p213
        %s351 = sand.u32 %s203, 1
        %s352 = scalar_lea.sflag [#allocation7], %s351
        %s353 = sand.u32 %s203, 1
        %s354 = smul.addr %s353, 8
        %s355 = scalar_lea.vmem [#allocation8], %s354
        %p356 = pneg %p237
        %p357 = pneg %p234
        %p358 = pneg %p258
        %p359 = pneg %p255
        %s360 = ssub.s32 1, %s29
        %s361 = smul.u32 %s360, %s30
        %p362 = scmp.lt.s32.totalorder %s361, 0
        %s363 = scalar_select %p362, %s361, 0
        %s364 = smul.addr %s363, 7
        %s365 = smul.addr %s364, 8
        %s366 = scalar_lea.vmem %s0, %s365
        %s367 = ssub.s32 1, %s29
        %s368 = smul.u32 %s367, %s30
        %s369 = smul.u32 %s29, %s30
        %p371 = scmp.eq.s32.totalorder %s29, 0
        // Predicated region
        $region53: #{multi_network_forward.1} parent=47 // pred_check
          %p372 = pneg %p371
        $region54: #{multi_network_forward.1} parent=47 // pred_check_branch
          %374 = sbr.rel (%p372) target = $region56
        $region55: #{multi_network_forward.1} parent=47 // pred_region
          %p375 = scmp.eq.s32.totalorder %s30, 0
          // Predicated region
          $region57: #{multi_network_forward.1} parent=55 // pred_check
            %p376 = pneg %p375
          $region58: #{multi_network_forward.1} parent=55 // pred_check_branch
            %378 = sbr.rel (%p376) target = $region60
          $region59: #{multi_network_forward.1} parent=55 // pred_region
            %379 = vst [vmem:[%s8] sm:$0x1] 0.0
            %380 = vst [vmem:[%s9] sm:$0x1] 0.0
          $region60: #{multi_network_forward.1} parent=55 // pred_fallthru
            _
          %v381 = vld [vmem:[%s366] sm:$0xff]
          %v382 = vld [vmem:[%s366 + $0x8] sm:$0xff]
          %v383 = vld [vmem:[%s366 + $0x10] sm:$0xff]
          %v384 = vld [vmem:[%s366 + $0x18] sm:$0xff]
          %v385 = vld [vmem:[%s366 + $0x20] sm:$0xff]
          %v386 = vld [vmem:[%s366 + $0x28] sm:$0xff]
          %v387 = vld [vmem:[%s366 + $0x30] sm:$0xff]
          %v388 = vpack.c.bf16 %v381, %v381
          %v389 = vpack.c.bf16 %v382, %v382
          %v390 = vpack.c.bf16 %v383, %v383
          %v391 = vpack.c.bf16 %v384, %v384
          %v392 = vpack.c.bf16 %v385, %v385
          %v393 = vpack.c.bf16 %v386, %v386
          %v394 = vpack.c.bf16 %v387, %v387
          %v395 = vld [vmem:[#allocation5] sm:$0xf]
          %v396 = vld [vmem:[#allocation5 + $0x4] sm:$0xf]
          %v397 = vld [vmem:[#allocation5 + $0x8] sm:$0xf]
          %v398 = vld [vmem:[#allocation5 + $0xc] sm:$0xf]
          %v399 = vld [vmem:[#allocation5 + $0x10] sm:$0xf]
          %v400 = vld [vmem:[#allocation5 + $0x14] sm:$0xf]
          %v401 = vld [vmem:[#allocation5 + $0x18] sm:$0xf]
          %v402 = vld [vmem:[#allocation5 + $0x1c] sm:$0xf]
          %v403 = vld [vmem:[#allocation5 + $0x20] sm:$0xf]
          %v404 = vld [vmem:[#allocation5 + $0x24] sm:$0xf]
          %v405 = vld [vmem:[#allocation5 + $0x28] sm:$0xf]
          %v406 = vld [vmem:[#allocation5 + $0x2c] sm:$0xf]
          %v407 = vld [vmem:[#allocation5 + $0x30] sm:$0xf]
          %v408 = vld [vmem:[#allocation5 + $0x34] sm:$0xf]
          %v409 = vld [vmem:[#allocation5 + $0x38] sm:$0xf]
          %v410 = vld [vmem:[#allocation5 + $0x3c] sm:$0xf]
          %v411 = vld [vmem:[#allocation5 + $0x40] sm:$0xf]
          %v412 = vld [vmem:[#allocation5 + $0x44] sm:$0xf]
          %v413 = vld [vmem:[#allocation5 + $0x48] sm:$0xf]
          %v414 = vld [vmem:[#allocation5 + $0x4c] sm:$0xf]
          %v415 = vld [vmem:[#allocation5 + $0x50] sm:$0xf]
          %v416 = vld [vmem:[#allocation5 + $0x54] sm:$0xf]
          %v417 = vld [vmem:[#allocation5 + $0x58] sm:$0xf]
          %v418 = vld [vmem:[#allocation5 + $0x5c] sm:$0xf]
          %v419 = vld [vmem:[#allocation5 + $0x60] sm:$0xf]
          %v420 = vld [vmem:[#allocation5 + $0x64] sm:$0xf]
          %v421 = vld [vmem:[#allocation5 + $0x68] sm:$0xf]
          %v422 = vld [vmem:[#allocation5 + $0x6c] sm:$0xf]
          %v423 = vld [vmem:[#allocation5 + $0x70] sm:$0xf]
          %v424 = vld [vmem:[#allocation5 + $0x74] sm:$0xf]
          %v425 = vld [vmem:[#allocation5 + $0x78] sm:$0xf]
          %v426 = vld [vmem:[#allocation5 + $0x7c] sm:$0xf]
          %v427 = vld [vmem:[#allocation5 + $0x80] sm:$0xf]
          %v428 = vld [vmem:[#allocation5 + $0x84] sm:$0xf]
          %v429 = vld [vmem:[#allocation5 + $0x88] sm:$0xf]
          %v430 = vld [vmem:[#allocation5 + $0x8c] sm:$0xf]
          %v431 = vld [vmem:[#allocation5 + $0x90] sm:$0xf]
          %v432 = vld [vmem:[#allocation5 + $0x94] sm:$0xf]
          %v433 = vld [vmem:[#allocation5 + $0x98] sm:$0xf]
          %v434 = vld [vmem:[#allocation5 + $0x9c] sm:$0xf]
          %v435 = vld [vmem:[#allocation5 + $0xa0] sm:$0xf]
          %v436 = vld [vmem:[#allocation5 + $0xa4] sm:$0xf]
          %v437 = vld [vmem:[#allocation5 + $0xa8] sm:$0xf]
          %v438 = vld [vmem:[#allocation5 + $0xac] sm:$0xf]
          %v439 = vld [vmem:[#allocation5 + $0xb0] sm:$0xf]
          %v440 = vld [vmem:[#allocation5 + $0xb4] sm:$0xf]
          %v441 = vld [vmem:[#allocation5 + $0xb8] sm:$0xf]
          %v442 = vld [vmem:[#allocation5 + $0xbc] sm:$0xf]
          %v443 = vld [vmem:[#allocation5 + $0xc0] sm:$0xf]
          %v444 = vld [vmem:[#allocation5 + $0xc4] sm:$0xf]
          %v445 = vld [vmem:[#allocation5 + $0xc8] sm:$0xf]
          %v446 = vld [vmem:[#allocation5 + $0xcc] sm:$0xf]
          %v447 = vld [vmem:[#allocation5 + $0xd0] sm:$0xf]
          %v448 = vld [vmem:[#allocation5 + $0xd4] sm:$0xf]
          %v449 = vld [vmem:[#allocation5 + $0xd8] sm:$0xf]
          %v450 = vld [vmem:[#allocation5 + $0xdc] sm:$0xf]
          %v451 = vld [vmem:[#allocation5 + $0xe0] sm:$0xf]
          %v452 = vld [vmem:[#allocation5 + $0xe4] sm:$0xf]
          %v453 = vld [vmem:[#allocation5 + $0xe8] sm:$0xf]
          %v454 = vld [vmem:[#allocation5 + $0xec] sm:$0xf]
          %v455 = vld [vmem:[#allocation5 + $0xf0] sm:$0xf]
          %v456 = vld [vmem:[#allocation5 + $0xf4] sm:$0xf]
          %v457 = vld [vmem:[#allocation5 + $0xf8] sm:$0xf]
          %v458 = vld [vmem:[#allocation5 + $0xfc] sm:$0xf]
          %v459 = vld [vmem:[#allocation5 + $0x100] sm:$0xf]
          %v460 = vld [vmem:[#allocation5 + $0x104] sm:$0xf]
          %v461 = vld [vmem:[#allocation5 + $0x108] sm:$0xf]
          %v462 = vld [vmem:[#allocation5 + $0x10c] sm:$0xf]
          %v463 = vld [vmem:[#allocation5 + $0x110] sm:$0xf]
          %v464 = vld [vmem:[#allocation5 + $0x114] sm:$0xf]
          %v465 = vld [vmem:[#allocation5 + $0x118] sm:$0xf]
          %v466 = vld [vmem:[#allocation5 + $0x11c] sm:$0xf]
          %v467 = vld [vmem:[#allocation5 + $0x120] sm:$0xf]
          %v468 = vld [vmem:[#allocation5 + $0x124] sm:$0xf]
          %v469 = vld [vmem:[#allocation5 + $0x128] sm:$0xf]
          %v470 = vld [vmem:[#allocation5 + $0x12c] sm:$0xf]
          %v471 = vld [vmem:[#allocation5 + $0x130] sm:$0xf]
          %v472 = vld [vmem:[#allocation5 + $0x134] sm:$0xf]
          %v473 = vld [vmem:[#allocation5 + $0x138] sm:$0xf]
          %v474 = vld [vmem:[#allocation5 + $0x13c] sm:$0xf]
          %v475 = vld [vmem:[#allocation5 + $0x140] sm:$0xf]
          %v476 = vld [vmem:[#allocation5 + $0x144] sm:$0xf]
          %v477 = vld [vmem:[#allocation5 + $0x148] sm:$0xf]
          %v478 = vld [vmem:[#allocation5 + $0x14c] sm:$0xf]
          %v479 = vld [vmem:[#allocation5 + $0x150] sm:$0xf]
          %v480 = vld [vmem:[#allocation5 + $0x154] sm:$0xf]
          %v481 = vld [vmem:[#allocation5 + $0x158] sm:$0xf]
          %v482 = vld [vmem:[#allocation5 + $0x15c] sm:$0xf]
          %v483 = vld [vmem:[#allocation5 + $0x160] sm:$0xf]
          %v484 = vld [vmem:[#allocation5 + $0x164] sm:$0xf]
          %v485 = vld [vmem:[#allocation5 + $0x168] sm:$0xf]
          %v486 = vld [vmem:[#allocation5 + $0x16c] sm:$0xf]
          %v487 = vld [vmem:[#allocation5 + $0x170] sm:$0xf]
          %v488 = vld [vmem:[#allocation5 + $0x174] sm:$0xf]
          %v489 = vld [vmem:[#allocation5 + $0x178] sm:$0xf]
          %v490 = vld [vmem:[#allocation5 + $0x17c] sm:$0xf]
          %v491 = vld [vmem:[#allocation5 + $0x180] sm:$0xf]
          %v492 = vld [vmem:[#allocation5 + $0x184] sm:$0xf]
          %v493 = vld [vmem:[%s2] sm:$0x1]
          %v495 = vlaneseq
          %v496 = vshrl.u32 %v495, 7
          %v497 = vsub.s32 0, %v496
          %v498 = vrot.slane %v493, %v497
          %v598 = vunpack.c.l.b16 %v395
          %v599 = vunpack.c.l.b16 %v396
          %v600 = vunpack.c.l.b16 %v397
          %v601 = vunpack.c.l.b16 %v398
          %v602 = vunpack.c.l.b16 %v399
          %v603 = vunpack.c.l.b16 %v400
          %v604 = vunpack.c.l.b16 %v401
          %v605 = vunpack.c.l.b16 %v402
          %v606 = vunpack.c.l.b16 %v403
          %v607 = vunpack.c.l.b16 %v404
          %v608 = vunpack.c.l.b16 %v405
          %v609 = vunpack.c.l.b16 %v406
          %v610 = vunpack.c.l.b16 %v407
          %v611 = vunpack.c.l.b16 %v408
          %v612 = vunpack.c.l.b16 %v409
          %v613 = vunpack.c.l.b16 %v410
          %v614 = vunpack.c.l.b16 %v411
          %v615 = vunpack.c.l.b16 %v412
          %v616 = vunpack.c.l.b16 %v413
          %v617 = vunpack.c.l.b16 %v414
          %v618 = vunpack.c.l.b16 %v415
          %v619 = vunpack.c.l.b16 %v416
          %v620 = vunpack.c.l.b16 %v417
          %v621 = vunpack.c.l.b16 %v418
          %v622 = vunpack.c.l.b16 %v419
          %v623 = vunpack.c.l.b16 %v420
          %v624 = vunpack.c.l.b16 %v421
          %v625 = vunpack.c.l.b16 %v422
          %v626 = vunpack.c.l.b16 %v423
          %v627 = vunpack.c.l.b16 %v424
          %v628 = vunpack.c.l.b16 %v425
          %v629 = vunpack.c.l.b16 %v426
          %v630 = vunpack.c.l.b16 %v427
          %v631 = vunpack.c.l.b16 %v428
          %v632 = vunpack.c.l.b16 %v429
          %v633 = vunpack.c.l.b16 %v430
          %v634 = vunpack.c.l.b16 %v431
          %v635 = vunpack.c.l.b16 %v432
          %v636 = vunpack.c.l.b16 %v433
          %v637 = vunpack.c.l.b16 %v434
          %v638 = vunpack.c.l.b16 %v435
          %v639 = vunpack.c.l.b16 %v436
          %v640 = vunpack.c.l.b16 %v437
          %v641 = vunpack.c.l.b16 %v438
          %v642 = vunpack.c.l.b16 %v439
          %v643 = vunpack.c.l.b16 %v440
          %v644 = vunpack.c.l.b16 %v441
          %v645 = vunpack.c.l.b16 %v442
          %v646 = vunpack.c.l.b16 %v443
          %v647 = vunpack.c.l.b16 %v444
          %v648 = vunpack.c.l.b16 %v445
          %v649 = vunpack.c.l.b16 %v446
          %v650 = vunpack.c.l.b16 %v447
          %v651 = vunpack.c.l.b16 %v448
          %v652 = vunpack.c.l.b16 %v449
          %v653 = vunpack.c.l.b16 %v450
          %v654 = vunpack.c.l.b16 %v451
          %v655 = vunpack.c.l.b16 %v452
          %v656 = vunpack.c.l.b16 %v453
          %v657 = vunpack.c.l.b16 %v454
          %v658 = vunpack.c.l.b16 %v455
          %v659 = vunpack.c.l.b16 %v456
          %v660 = vunpack.c.l.b16 %v457
          %v661 = vunpack.c.l.b16 %v458
          %v662 = vunpack.c.l.b16 %v459
          %v663 = vunpack.c.l.b16 %v460
          %v664 = vunpack.c.l.b16 %v461
          %v665 = vunpack.c.l.b16 %v462
          %v666 = vunpack.c.l.b16 %v463
          %v667 = vunpack.c.l.b16 %v464
          %v668 = vunpack.c.l.b16 %v465
          %v669 = vunpack.c.l.b16 %v466
          %v670 = vunpack.c.l.b16 %v467
          %v671 = vunpack.c.l.b16 %v468
          %v672 = vunpack.c.l.b16 %v469
          %v673 = vunpack.c.l.b16 %v470
          %v674 = vunpack.c.l.b16 %v471
          %v675 = vunpack.c.l.b16 %v472
          %v676 = vunpack.c.l.b16 %v473
          %v677 = vunpack.c.l.b16 %v474
          %v678 = vunpack.c.l.b16 %v475
          %v679 = vunpack.c.l.b16 %v476
          %v680 = vunpack.c.l.b16 %v477
          %v681 = vunpack.c.l.b16 %v478
          %v682 = vunpack.c.l.b16 %v479
          %v683 = vunpack.c.l.b16 %v480
          %v684 = vunpack.c.l.b16 %v481
          %v685 = vunpack.c.l.b16 %v482
          %v686 = vunpack.c.l.b16 %v483
          %v687 = vunpack.c.l.b16 %v484
          %v688 = vunpack.c.l.b16 %v485
          %v689 = vunpack.c.l.b16 %v486
          %v690 = vunpack.c.l.b16 %v487
          %v691 = vunpack.c.l.b16 %v488
          %v692 = vunpack.c.l.b16 %v489
          %v693 = vunpack.c.l.b16 %v490
          %v694 = vunpack.c.l.b16 %v491
          %v695 = vunpack.c.l.b16 %v492
          %v696 = vpack.c.b16 %v599, %v598
          %v697 = vpack.c.b16 %v601, %v600
          %v698 = vpack.c.b16 %v603, %v602
          %v699 = vpack.c.b16 %v605, %v604
          %v700 = vpack.c.b16 %v607, %v606
          %v701 = vpack.c.b16 %v609, %v608
          %v702 = vpack.c.b16 %v611, %v610
          %v703 = vpack.c.b16 %v613, %v612
          %v704 = vpack.c.b16 %v615, %v614
          %v705 = vpack.c.b16 %v617, %v616
          %v706 = vpack.c.b16 %v619, %v618
          %v707 = vpack.c.b16 %v621, %v620
          %v708 = vpack.c.b16 %v623, %v622
          %v709 = vpack.c.b16 %v625, %v624
          %v710 = vpack.c.b16 %v627, %v626
          %v711 = vpack.c.b16 %v629, %v628
          %v712 = vpack.c.b16 %v631, %v630
          %v713 = vpack.c.b16 %v633, %v632
          %v714 = vpack.c.b16 %v635, %v634
          %v715 = vpack.c.b16 %v637, %v636
          %v716 = vpack.c.b16 %v639, %v638
          %v717 = vpack.c.b16 %v641, %v640
          %v718 = vpack.c.b16 %v643, %v642
          %v719 = vpack.c.b16 %v645, %v644
          %v720 = vpack.c.b16 %v647, %v646
          %v721 = vpack.c.b16 %v649, %v648
          %v722 = vpack.c.b16 %v651, %v650
          %v723 = vpack.c.b16 %v653, %v652
          %v724 = vpack.c.b16 %v655, %v654
          %v725 = vpack.c.b16 %v657, %v656
          %v726 = vpack.c.b16 %v659, %v658
          %v727 = vpack.c.b16 %v661, %v660
          %v728 = vpack.c.b16 %v663, %v662
          %v729 = vpack.c.b16 %v665, %v664
          %v730 = vpack.c.b16 %v667, %v666
          %v731 = vpack.c.b16 %v669, %v668
          %v732 = vpack.c.b16 %v671, %v670
          %v733 = vpack.c.b16 %v673, %v672
          %v734 = vpack.c.b16 %v675, %v674
          %v735 = vpack.c.b16 %v677, %v676
          %v736 = vpack.c.b16 %v679, %v678
          %v737 = vpack.c.b16 %v681, %v680
          %v738 = vpack.c.b16 %v683, %v682
          %v739 = vpack.c.b16 %v685, %v684
          %v740 = vpack.c.b16 %v687, %v686
          %v741 = vpack.c.b16 %v689, %v688
          %v742 = vpack.c.b16 %v691, %v690
          %v743 = vpack.c.b16 %v693, %v692
          %v744 = vpack.c.b16 %v695, %v694
          %vm794 = vcmask 130048
          %v796 = vsel %vm794, %v394, 0
          %798 = vmatprep.subr.bf16.mxu0 0
          %799 = vmatpush1.bf16.msra.mxu0 %v703
          %800 = vmatprep.subr.bf16.mxu0 0
          %801 = vmatpush1.bf16.msra.mxu0 %v702
          %802 = vmatprep.subr.bf16.mxu0 0
          %803 = vmatpush1.bf16.msra.mxu0 %v701
          %804 = vmatprep.subr.bf16.mxu0 0
          %805 = vmatpush1.bf16.msra.mxu0 %v700
          %806 = vmatprep.subr.bf16.mxu0 0
          %807 = vmatpush1.bf16.msra.mxu0 %v699
          %808 = vmatprep.subr.bf16.mxu0 0
          %809 = vmatpush1.bf16.msra.mxu0 %v698
          %810 = vmatprep.subr.bf16.mxu0 0
          %811 = vmatpush1.bf16.msra.mxu0 %v697
          %812 = vmatprep.subr.bf16.mxu0 0
          %813 = vmatpush1.bf16.msra.mxu0 %v696
          %814 = vmatprep.subr.bf16.mxu0 0
          %815 = vmatpush2.bf16.msra.mxu0 %v711
          %816 = vmatprep.subr.bf16.mxu0 0
          %817 = vmatpush2.bf16.msra.mxu0 %v710
          %818 = vmatprep.subr.bf16.mxu0 0
          %819 = vmatpush2.bf16.msra.mxu0 %v709
          %820 = vmatprep.subr.bf16.mxu0 0
          %821 = vmatpush2.bf16.msra.mxu0 %v708
          %822 = vmatprep.subr.bf16.mxu0 0
          %823 = vmatpush2.bf16.msra.mxu0 %v707
          %824 = vmatprep.subr.bf16.mxu0 0
          %825 = vmatpush2.bf16.msra.mxu0 %v706
          %826 = vmatprep.subr.bf16.mxu0 0
          %827 = vmatpush2.bf16.msra.mxu0 %v705
          %828 = vmatprep.subr.bf16.mxu0 0
          %829 = vmatpush2.bf16.msra.mxu0 %v704
          %830 = vmatprep.mubr.bf16.mxu0 %v389
          %831 = vmatmul.mubr.bf16.gmra.mxu0 %v388
          %v832 = vpop.f32.mrf.mxu0
          %v833 = vadd.f32 %v498, %v832
          %v834 = vpop.f32.mrf.mxu0
          %v835 = vpop.f32.mrf.mxu0
          %v836 = vpop.f32.mrf.mxu0
          %837 = vdwg.mxu0
          %838 = vmatprep.subr.bf16.mxu0 0
          %839 = vmatpush1.bf16.msra.mxu0 %v719
          %840 = vmatprep.subr.bf16.mxu0 0
          %841 = vmatpush1.bf16.msra.mxu0 %v718
          %842 = vmatprep.subr.bf16.mxu0 0
          %843 = vmatpush1.bf16.msra.mxu0 %v717
          %844 = vmatprep.subr.bf16.mxu0 0
          %845 = vmatpush1.bf16.msra.mxu0 %v716
          %846 = vmatprep.subr.bf16.mxu0 0
          %847 = vmatpush1.bf16.msra.mxu0 %v715
          %848 = vmatprep.subr.bf16.mxu0 0
          %849 = vmatpush1.bf16.msra.mxu0 %v714
          %850 = vmatprep.subr.bf16.mxu0 0
          %851 = vmatpush1.bf16.msra.mxu0 %v713
          %852 = vmatprep.subr.bf16.mxu0 0
          %853 = vmatpush1.bf16.msra.mxu0 %v712
          %854 = vmatprep.subr.bf16.mxu0 0
          %855 = vmatpush2.bf16.msra.mxu0 %v727
          %856 = vmatprep.subr.bf16.mxu0 0
          %857 = vmatpush2.bf16.msra.mxu0 %v726
          %858 = vmatprep.subr.bf16.mxu0 0
          %859 = vmatpush2.bf16.msra.mxu0 %v725
          %860 = vmatprep.subr.bf16.mxu0 0
          %861 = vmatpush2.bf16.msra.mxu0 %v724
          %862 = vmatprep.subr.bf16.mxu0 0
          %863 = vmatpush2.bf16.msra.mxu0 %v723
          %864 = vmatprep.subr.bf16.mxu0 0
          %865 = vmatpush2.bf16.msra.mxu0 %v722
          %866 = vmatprep.subr.bf16.mxu0 0
          %867 = vmatpush2.bf16.msra.mxu0 %v721
          %868 = vmatprep.subr.bf16.mxu0 0
          %869 = vmatpush2.bf16.msra.mxu0 %v720
          %870 = vmatprep.mubr.bf16.mxu0 %v391
          %871 = vmatmul.mubr.bf16.gmra.mxu0 %v390
          %v872 = vpop.f32.mrf.mxu0
          %v873 = vadd.f32 %v833, %v872
          %v874 = vpop.f32.mrf.mxu0
          %v875 = vpop.f32.mrf.mxu0
          %v876 = vpop.f32.mrf.mxu0
          %877 = vdwg.mxu0
          %878 = vmatprep.subr.bf16.mxu0 0
          %879 = vmatpush1.bf16.msra.mxu0 %v735
          %880 = vmatprep.subr.bf16.mxu0 0
          %881 = vmatpush1.bf16.msra.mxu0 %v734
          %882 = vmatprep.subr.bf16.mxu0 0
          %883 = vmatpush1.bf16.msra.mxu0 %v733
          %884 = vmatprep.subr.bf16.mxu0 0
          %885 = vmatpush1.bf16.msra.mxu0 %v732
          %886 = vmatprep.subr.bf16.mxu0 0
          %887 = vmatpush1.bf16.msra.mxu0 %v731
          %888 = vmatprep.subr.bf16.mxu0 0
          %889 = vmatpush1.bf16.msra.mxu0 %v730
          %890 = vmatprep.subr.bf16.mxu0 0
          %891 = vmatpush1.bf16.msra.mxu0 %v729
          %892 = vmatprep.subr.bf16.mxu0 0
          %893 = vmatpush1.bf16.msra.mxu0 %v728
          %894 = vmatprep.subr.bf16.mxu0 0
          %895 = vmatpush2.bf16.msra.mxu0 %v743
          %896 = vmatprep.subr.bf16.mxu0 0
          %897 = vmatpush2.bf16.msra.mxu0 %v742
          %898 = vmatprep.subr.bf16.mxu0 0
          %899 = vmatpush2.bf16.msra.mxu0 %v741
          %900 = vmatprep.subr.bf16.mxu0 0
          %901 = vmatpush2.bf16.msra.mxu0 %v740
          %902 = vmatprep.subr.bf16.mxu0 0
          %903 = vmatpush2.bf16.msra.mxu0 %v739
          %904 = vmatprep.subr.bf16.mxu0 0
          %905 = vmatpush2.bf16.msra.mxu0 %v738
          %906 = vmatprep.subr.bf16.mxu0 0
          %907 = vmatpush2.bf16.msra.mxu0 %v737
          %908 = vmatprep.subr.bf16.mxu0 0
          %909 = vmatpush2.bf16.msra.mxu0 %v736
          %910 = vmatprep.mubr.bf16.mxu0 %v393
          %911 = vmatmul.mubr.bf16.gmra.mxu0 %v392
          %v912 = vpop.f32.mrf.mxu0
          %v913 = vadd.f32 %v873, %v912
          %v914 = vpop.f32.mrf.mxu0
          %v915 = vpop.f32.mrf.mxu0
          %v916 = vpop.f32.mrf.mxu0
          %917 = vdwg.mxu0
          %918 = vmatprep.subr.bf16.mxu0 0
          %919 = vmatpush1.bf16.msra.mxu0 0
          %920 = vmatprep.subr.bf16.mxu0 0
          %921 = vmatpush1.bf16.msra.mxu0 0
          %922 = vmatprep.subr.bf16.mxu0 0
          %923 = vmatpush1.bf16.msra.mxu0 0
          %924 = vmatprep.subr.bf16.mxu0 0
          %925 = vmatpush1.bf16.msra.mxu0 0
          %926 = vmatprep.subr.bf16.mxu0 0
          %927 = vmatpush1.bf16.msra.mxu0 0
          %928 = vmatprep.subr.bf16.mxu0 0
          %929 = vmatpush1.bf16.msra.mxu0 0
          %930 = vmatprep.subr.bf16.mxu0 0
          %931 = vmatpush1.bf16.msra.mxu0 0
          %932 = vmatprep.subr.bf16.mxu0 0
          %933 = vmatpush1.bf16.msra.mxu0 %v744
          %934 = vmatprep.subr.bf16.mxu0 0
          %935 = vmatpush2.bf16.msra.mxu0 0
          %936 = vmatprep.subr.bf16.mxu0 0
          %937 = vmatpush2.bf16.msra.mxu0 0
          %938 = vmatprep.subr.bf16.mxu0 0
          %939 = vmatpush2.bf16.msra.mxu0 0
          %940 = vmatprep.subr.bf16.mxu0 0
          %941 = vmatpush2.bf16.msra.mxu0 0
          %942 = vmatprep.subr.bf16.mxu0 0
          %943 = vmatpush2.bf16.msra.mxu0 0
          %944 = vmatprep.subr.bf16.mxu0 0
          %945 = vmatpush2.bf16.msra.mxu0 0
          %946 = vmatprep.subr.bf16.mxu0 0
          %947 = vmatpush2.bf16.msra.mxu0 0
          %948 = vmatprep.subr.bf16.mxu0 0
          %949 = vmatpush2.bf16.msra.mxu0 0
          %950 = vmatprep.mubr.bf16.mxu0 0
          %951 = vmatmul.mubr.bf16.gmra.mxu0 %v796
          %v952 = vpop.f32.mrf.mxu0
          %v953 = vadd.f32 %v913, %v952
          %v954 = vpop.f32.mrf.mxu0
          %v955 = vpop.f32.mrf.mxu0
          %v956 = vpop.f32.mrf.mxu0
          %957 = vdwg.mxu0
          %s958 = smul.u32 %s30, 8
          %v959 = vlaneseq
          %v960 = vshrl.u32 %v959, 7
          %v961 = vstv %s958
          %v962 = vadd.s32 %v961, %v960
          %vm963 = vcmp.lt.s32.totalorder %v962, 8
          %v964 = vsel %vm963, %v953, 0.0
          %v965 = vld [vmem:[%s8] sm:$0x1]
          %v966 = vrot.slane %v964, 4
          %v967 = vadd.f32 %v964, %v966
          %v968 = vrot.slane %v967, 2
          %v969 = vadd.f32 %v967, %v968
          %v970 = vrot.slane %v969, 1
          %v971 = vadd.f32 %v969, %v970
          %v972 = vadd.f32 %v965, %v971
          %973 = vst [vmem:[%s8] sm:$0x1] %v972
          %v974 = vld [vmem:[%s9] sm:$0x1]
          %v975 = vmul.f32 %v964, %v964
          %v976 = vrot.slane %v975, 4
          %v977 = vadd.f32 %v975, %v976
          %v978 = vrot.slane %v977, 2
          %v979 = vadd.f32 %v977, %v978
          %v980 = vrot.slane %v979, 1
          %v981 = vadd.f32 %v979, %v980
          %v982 = vadd.f32 %v974, %v981
          %983 = vst [vmem:[%s9] sm:$0x1] %v982
          %v984 = vpack.c.bf16 %v953, %v953
          %s985 = smul.addr %s30, 4
          %s986 = scalar_lea.vmem [#allocation2], %s985
          %987 = vst [vmem:[%s986] sm:$0xf] %v984
        $region56: #{multi_network_forward.1} parent=47 // pred_fallthru
          _
        %p988 = scmp.eq.s32.totalorder %s29, 1
        // Predicated region
        $region61: #{multi_network_forward.1} parent=47 // pred_check
          %p989 = pneg %p988
        $region62: #{multi_network_forward.1} parent=47 // pred_check_branch
          %991 = sbr.rel (%p989) target = $region64
        $region63: #{multi_network_forward.1} parent=47 // pred_region
          %p992 = scmp.eq.s32.totalorder %s30, 0
          // Predicated region
          $region65: #{multi_network_forward.1} parent=63 // pred_check
            %p993 = pneg %p992
          $region66: #{multi_network_forward.1} parent=63 // pred_check_branch
            %995 = sbr.rel (%p993) target = $region68
          $region67: #{multi_network_forward.1} parent=63 // pred_region
            %v996 = vld [vmem:[%s8] sm:$0x1]
            %v997 = vmul.f32 %v996, 0.125
            %v998 = vld [vmem:[%s9] sm:$0x1]
            %v999 = vmul.f32 %v998, 0.125
            %v1000 = vmul.f32 %v997, %v997
            %v1001 = vsub.f32 %v999, %v1000
            %v1002 = vmax.f32 %v1001, 0.0
            %1003 = vst [vmem:[%s8] sm:$0x1] %v997
            %1004 = vst [vmem:[%s9] sm:$0x1] %v1002
            %v1005 = vld [vmem:[%s3] sm:$0x1]
            %v1006 = vadd.f32 %v1002, 1e-05
            %v1007 = vrsqrt.pop %v1006
            %v1008 = vmul.f32 %v1005, %v1007
            %1009 = vst [vmem:[#allocation3] sm:$0x1] %v1008
            %v1010 = vld [vmem:[%s4] sm:$0x1]
            %v1011 = vmul.f32 %v1008, %v997
            %v1012 = vsub.f32 %v1010, %v1011
            %1013 = vst [vmem:[#allocation4] sm:$0x1] %v1012
          $region68: #{multi_network_forward.1} parent=63 // pred_fallthru
            _
          %s1014 = smul.addr %s30, 4
          %s1015 = scalar_lea.vmem [#allocation2], %s1014
          %v1016 = vld [vmem:[%s1015] sm:$0xf]
          %v1017 = vunpack.c.l.bf16 %v1016
          %v1018 = vld [vmem:[#allocation3] sm:$0x1]
          %v1020 = vlaneseq
          %v1021 = vshrl.u32 %v1020, 7
          %v1022 = vsub.s32 0, %v1021
          %v1023 = vrot.slane %v1018, %v1022
          %v1025 = vmul.f32 %v1017, %v1023
          %v1026 = vld [vmem:[#allocation4] sm:$0x1]
          %v1028 = vlaneseq
          %v1029 = vshrl.u32 %v1028, 7
          %v1030 = vsub.s32 0, %v1029
          %v1031 = vrot.slane %v1026, %v1030
          %v1033 = vadd.f32 %v1025, %v1031
          %v1034 = vmax.f32 %v1033, 0.0
          %v1035 = vpack.c.bf16 %v1034, %v1034
          %v1036 = vld [vmem:[%s5] sm:$0xf]
          %v1037 = vld [vmem:[%s5 + $0x4] sm:$0xf]
          %v1038 = vld [vmem:[%s5 + $0x8] sm:$0xf]
          %v1039 = vld [vmem:[%s5 + $0xc] sm:$0xf]
          %v1040 = vld [vmem:[%s5 + $0x10] sm:$0xf]
          %v1041 = vld [vmem:[%s5 + $0x14] sm:$0xf]
          %v1042 = vld [vmem:[%s5 + $0x18] sm:$0xf]
          %v1043 = vld [vmem:[%s5 + $0x1c] sm:$0xf]
          %v1044 = vld [vmem:[%s5 + $0x20] sm:$0xf]
          %v1045 = vld [vmem:[%s5 + $0x24] sm:$0xf]
          %v1046 = vld [vmem:[%s5 + $0x28] sm:$0xf]
          %v1047 = vld [vmem:[%s5 + $0x2c] sm:$0xf]
          %v1048 = vld [vmem:[%s5 + $0x30] sm:$0xf]
          %v1049 = vld [vmem:[%s5 + $0x34] sm:$0xf]
          %v1050 = vld [vmem:[%s5 + $0x38] sm:$0xf]
          %v1051 = vld [vmem:[%s5 + $0x3c] sm:$0xf]
          %v1052 = vld [vmem:[%s6] sm:$0x1]
          %v1054 = vlaneseq
          %v1055 = vshrl.u32 %v1054, 7
          %v1056 = vsub.s32 0, %v1055
          %v1057 = vrot.slane %v1052, %v1056
          %v1075 = vunpack.c.l.b16 %v1036
          %v1076 = vunpack.c.l.b16 %v1037
          %v1077 = vunpack.c.l.b16 %v1038
          %v1078 = vunpack.c.l.b16 %v1039
          %v1079 = vunpack.c.l.b16 %v1040
          %v1080 = vunpack.c.l.b16 %v1041
          %v1081 = vunpack.c.l.b16 %v1042
          %v1082 = vunpack.c.l.b16 %v1043
          %v1083 = vunpack.c.l.b16 %v1044
          %v1084 = vunpack.c.l.b16 %v1045
          %v1085 = vunpack.c.l.b16 %v1046
          %v1086 = vunpack.c.l.b16 %v1047
          %v1087 = vunpack.c.l.b16 %v1048
          %v1088 = vunpack.c.l.b16 %v1049
          %v1089 = vunpack.c.l.b16 %v1050
          %v1090 = vunpack.c.l.b16 %v1051
          %v1091 = vpack.c.b16 %v1076, %v1075
          %v1092 = vpack.c.b16 %v1078, %v1077
          %v1093 = vpack.c.b16 %v1080, %v1079
          %v1094 = vpack.c.b16 %v1082, %v1081
          %v1095 = vpack.c.b16 %v1084, %v1083
          %v1096 = vpack.c.b16 %v1086, %v1085
          %v1097 = vpack.c.b16 %v1088, %v1087
          %v1098 = vpack.c.b16 %v1090, %v1089
          %1107 = vmatprep.subr.bf16.mxu0 0
          %1108 = vmatpush1.bf16.msra.mxu0 %v1098
          %1109 = vmatprep.subr.bf16.mxu0 0
          %1110 = vmatpush1.bf16.msra.mxu0 %v1097
          %1111 = vmatprep.subr.bf16.mxu0 0
          %1112 = vmatpush1.bf16.msra.mxu0 %v1096
          %1113 = vmatprep.subr.bf16.mxu0 0
          %1114 = vmatpush1.bf16.msra.mxu0 %v1095
          %1115 = vmatprep.subr.bf16.mxu0 0
          %1116 = vmatpush1.bf16.msra.mxu0 %v1094
          %1117 = vmatprep.subr.bf16.mxu0 0
          %1118 = vmatpush1.bf16.msra.mxu0 %v1093
          %1119 = vmatprep.subr.bf16.mxu0 0
          %1120 = vmatpush1.bf16.msra.mxu0 %v1092
          %1121 = vmatprep.subr.bf16.mxu0 0
          %1122 = vmatpush1.bf16.msra.mxu0 %v1091
          %1123 = vmatprep.subr.bf16.mxu0 0
          %1124 = vmatpush2.bf16.msra.mxu0 0
          %1125 = vmatprep.subr.bf16.mxu0 0
          %1126 = vmatpush2.bf16.msra.mxu0 0
          %1127 = vmatprep.subr.bf16.mxu0 0
          %1128 = vmatpush2.bf16.msra.mxu0 0
          %1129 = vmatprep.subr.bf16.mxu0 0
          %1130 = vmatpush2.bf16.msra.mxu0 0
          %1131 = vmatprep.subr.bf16.mxu0 0
          %1132 = vmatpush2.bf16.msra.mxu0 0
          %1133 = vmatprep.subr.bf16.mxu0 0
          %1134 = vmatpush2.bf16.msra.mxu0 0
          %1135 = vmatprep.subr.bf16.mxu0 0
          %1136 = vmatpush2.bf16.msra.mxu0 0
          %1137 = vmatprep.subr.bf16.mxu0 0
          %1138 = vmatpush2.bf16.msra.mxu0 0
          %1139 = vmatprep.mubr.bf16.mxu0 0
          %1140 = vmatmul.mubr.bf16.gmra.mxu0 %v1035
          %v1141 = vpop.f32.mrf.mxu0
          %v1142 = vadd.f32 %v1057, %v1141
          %v1143 = vpop.f32.mrf.mxu0
          %v1144 = vpop.f32.mrf.mxu0
          %v1145 = vpop.f32.mrf.mxu0
          %1146 = vdwg.mxu0
          %vm1147 = vcmask 80896
          %1148 = vst.msk [vmem:[%s355] sm:$0xff] %vm1147, %v1142
        $region64: #{multi_network_forward.1} parent=47 // pred_fallthru
          _
        %s1149 = sand.u32 %s203, 1
        %s1150 = scalar_lea.sflag [#allocation7], %s1149
        %s1151 = sand.u32 %s203, 1
        %s1152 = smul.addr %s1151, 8
        %s1153 = scalar_lea.vmem [#allocation8], %s1152
        // Predicated region
        $region69: #{multi_network_forward.1} parent=47 // pred_check
          %p1154 = pneg %p213
        $region70: #{multi_network_forward.1} parent=47 // pred_check_branch
          %1156 = sbr.rel (%p1154) target = $region72
        $region71: #{multi_network_forward.1} parent=47 // pred_region
          %s1157 = smul.u32 %s29, %s30
          %s1159 = ssub.s32 128, 128
          %1160 = vsyncadd %s1150, %s1159
          %s1161 = smul.addr %s1157, 128
          %s1162 = scalar_lea.hbm %s7, %s1161
          %s1164 = sshll.u32 %s1153, 4
          %s1165 = int_to_ptr.vmem [resolvable:$true] %s1164
          %1167 = dma.vmem_to_hbm [thread:$0]  %s1165, 128, %s1162, %s1150
        $region72: #{multi_network_forward.1} parent=47 // pred_fallthru
          _
        // Predicated region
        $region73: #{multi_network_forward.1} parent=47 // pred_check
          %p1168 = pneg %p234
        $region74: #{multi_network_forward.1} parent=47 // pred_check_branch
          %1170 = sbr.rel (%p1168) target = $region76
        $region75: #{multi_network_forward.1} parent=47 // pred_region
          _
        $region76: #{multi_network_forward.1} parent=47 // pred_fallthru
          _
        // Predicated region
        $region77: #{multi_network_forward.1} parent=47 // pred_check
          %p1171 = pneg %p255
        $region78: #{multi_network_forward.1} parent=47 // pred_check_branch
          %1173 = sbr.rel (%p1171) target = $region80
        $region79: #{multi_network_forward.1} parent=47 // pred_region
          _
        $region80: #{multi_network_forward.1} parent=47 // pred_fallthru
          _
        // Predicated region
        $region81: #{multi_network_forward.1} parent=47 // pred_check
          %p1174 = pneg %p234
        $region82: #{multi_network_forward.1} parent=47 // pred_check_branch
          %1176 = sbr.rel (%p1174) target = $region84
        $region83: #{multi_network_forward.1} parent=47 // pred_region
          _
        $region84: #{multi_network_forward.1} parent=47 // pred_fallthru
          _
        // Predicated region
        $region85: #{multi_network_forward.1} parent=47 // pred_check
          %p1177 = pneg %p255
        $region86: #{multi_network_forward.1} parent=47 // pred_check_branch
          %1179 = sbr.rel (%p1177) target = $region88
        $region87: #{multi_network_forward.1} parent=47 // pred_region
          _
        $region88: #{multi_network_forward.1} parent=47 // pred_fallthru
          _
      $region48: #{multi_network_forward.1} parent=5 // pred_fallthru
        _
      %p1180 = scmp.le.s32.totalorder 2, %s20
      // Predicated region
      $region89: #{multi_network_forward.1} parent=5 // pred_check
        %p1181 = pneg %p1180
      $region90: #{multi_network_forward.1} parent=5 // pred_check_branch
        %1183 = sbr.rel (%p1181) target = $region92
      $region91: #{multi_network_forward.1} parent=5 // pred_region
        %s1184 = ssub.s32 %s20, 2
        // Predicated region
        $region93: #{multi_network_forward.1} parent=91 // pred_check
          %p1185 = pneg %p219
        $region94: #{multi_network_forward.1} parent=91 // pred_check_branch
          %1187 = sbr.rel (%p1185) target = $region96
        $region95: #{multi_network_forward.1} parent=91 // pred_region
          %s1188 = sand.u32 %s204, 1
          %s1189 = scalar_lea.sflag [#allocation7], %s1188
          %s1190 = sand.u32 %s204, 1
          %s1191 = smul.addr %s1190, 8
          %s1192 = scalar_lea.vmem [#allocation8], %s1191
          %1193 = dma.done %s1189, 128
        $region96: #{multi_network_forward.1} parent=91 // pred_fallthru
          _
      $region92: #{multi_network_forward.1} parent=5 // pred_fallthru
        _
    $region6: #{multi_network_forward.1} parent=1 // loop_footer
      %s24 = sadd.s32 1, %s20
    $region7: #{multi_network_forward.1} parent=1 // loop_footer_branch
      %19 = sbr.rel target = $region3
    $region8: #{multi_network_forward.1} parent=1 // loop_exit
      _
    %1194 = vsyncpa [#allocation6], 1
    %s1195 = scalar_lea.sflag [#allocation6], 1
    %1196 = vsyncpa %s1195, 1
    %1197 = vsyncpa [#allocation7], 1
    %s1198 = scalar_lea.sflag [#allocation7], 1
    %1199 = vsyncpa %s1198, 1

</llo_original>
